<compile_context>
chip_gen: v6e
topology: v6e:2x2x1
jax: 0.10.0
libtpu: 0.0.40
codegen_flags: <defaults>
</compile_context>

<pallas_src>
import functools

import jax
import jax.numpy as jnp
from jax import lax
from jax.experimental import pallas as pl
from jax.experimental.pallas import tpu as pltpu

HIDDEN = 32   # hidden_dim
WS = 2        # window_size


# ----------------------------------------------------------------------------
# Fused two-stage bidirectional tanh-RNN kernel.
#
#   stage 1: time = wp (T1), batch rows n1 = hp*B + b (N1 = Hp*B)
#   stage 2: time = hp (T2), batch rows n2 = wp*B + b (N2 = Wp*B)
#
# Weight packing (done once at init):
#   w*  = [W_ih_fwd | W_ih_bwd]        (in_dim, 2H)   lane-concat
#   u*  = blockdiag(W_hh_fwd, W_hh_bwd) (2H, 2H)
#   b*  = [b_fwd | b_bwd]              (1, 2H)        (b_ih + b_hh folded)
# perm is the (T2*N2, T1*N1) row-permutation matrix realizing the inter-stage
# re-block  row(hp, wp, b) <- row(wp, hp, b)  as a single MXU matmul.
# ----------------------------------------------------------------------------
def _renet_fused_kernel(x1_ref, w1_ref, u1_ref, b1_ref,
                        perm_ref, w2_ref, u2_ref, b2_ref,
                        out_ref, *, T1, T2, B, H):
    H2 = 2 * H
    N1 = T2 * B          # stage-1 batch rows (= Hp*B)
    N2 = T1 * B          # stage-2 batch rows (= Wp*B)

    def fwd_mask(n):     # lanes [0, H) = forward direction, [H, 2H) = backward
        return lax.broadcasted_iota(jnp.int32, (n, H2), 1) < H

    m1 = fwd_mask(N1)
    m2 = fwd_mask(N2)

    def birnn(proj, u, T, N, mask):
        """Fused bidirectional recurrence over a hoisted projection slab.

        proj: (T*N, 2H) with proj[t*N+n] = [x_{t,n}@W_f + b_f | x_{t,n}@W_b + b_b].
        Returns (T*N, 2H) bidirectional output in natural time order
        ([:, :H] = forward at time t, [:, H:] = backward at time t).
        """
        h = jnp.zeros((N, H2), jnp.float32)
        hs = []
        for s in range(T):                                  # static unroll, T small
            # forward half driven by time s, backward half by time T-1-s;
            # both slices are 8-aligned register slices -> free; one vsel.
            drv = jnp.where(mask,
                            proj[s * N:(s + 1) * N, :],
                            proj[(T - 1 - s) * N:(T - s) * N, :])
            h = jnp.tanh(drv + jnp.dot(h, u, preferred_element_type=jnp.float32))
            hs.append(h)
        # bidi output at time t = [fwd from hs[t] | bwd from hs[T-1-t]] (lane select),
        # assembled once and kept in registers (no per-step masked stores).
        return jnp.concatenate(
            [jnp.where(mask, hs[t], hs[T - 1 - t]) for t in range(T)], axis=0)

    # ---------------- stage 1 (vertical sweep) ----------------
    # Hoisted input projection for both directions: one MXU matmul, bias folded.
    p1 = jnp.dot(x1_ref[...], w1_ref[...],
                 preferred_element_type=jnp.float32) + b1_ref[...]     # (T1*N1, 2H)
    o1 = birnn(p1, u1_ref[...], T1, N1, m1)                            # (T1*N1, 2H)

    # ---------------- inter-stage re-block + stage-2 projection ----------------
    # Project in stage-1 row order (one MXU matmul), then re-order rows to
    # stage-2 order with a dense permutation matmul (no sublane shuffles).
    p2 = jnp.dot(perm_ref[...],
                 jnp.dot(o1, w2_ref[...], preferred_element_type=jnp.float32),
                 preferred_element_type=jnp.float32) + b2_ref[...]     # (T2*N2, 2H)

    # ---------------- stage 2 (horizontal sweep) ----------------
    o2 = birnn(p2, u2_ref[...], T2, N2, m2)                            # (T2*N2, 2H)

    out_ref[...] = o2                                                  # one dense store


def _interstage_perm(T1, T2, B):
    """Row-permutation matrix: dest row (hp*N2 + wp*B + b) <- src row (wp*N1 + hp*B + b)."""
    N1 = T2 * B
    N2 = T1 * B
    i = jnp.arange(T2 * N2, dtype=jnp.int32)
    hp = i // N2
    wp = (i % N2) // B
    b = i % B
    src = wp * N1 + hp * B + b
    return (src[:, None] == jnp.arange(T1 * N1, dtype=jnp.int32)[None, :]
            ).astype(jnp.float32)


# ----------------------------------------------------------------------------
# JAX glue reproducing ReNetLayer.forward exactly (patch extraction + one
# permute at each end; nothing between the two sweeps — they live in the kernel).
# ----------------------------------------------------------------------------
def renet_forward(x, params1, params2, ws=WS, hidden=HIDDEN):
    B, C, Himg, Wimg = x.shape
    Hp, Wp = Himg // ws, Wimg // ws
    F = C * ws * ws
    H2 = 2 * hidden
    T1, N1 = Wp, Hp * B          # stage-1: sequence over width patches
    T2, N2 = Hp, Wp * B          # stage-2: sequence over height patches

    # get_valid_patches: (B,C,H,W) -> (B,Hp,Wp,F), torch feature order (c, wh, ww).
    patches = (x.reshape(B, C, Hp, ws, Wp, ws)
                 .transpose(0, 2, 4, 1, 3, 5)
                 .reshape(B, Hp, Wp, F))

    # Stage-1 input, 2-D: row = wp*(Hp*B) + hp*B + b (time-major, torch batch order).
    x1 = patches.transpose(2, 1, 0, 3).reshape(T1 * N1, F)

    perm = _interstage_perm(T1, T2, B)                     # (T2*N2, T1*N1) constant

    kernel = functools.partial(_renet_fused_kernel, T1=T1, T2=T2, B=B, H=hidden)

    out2d = pl.pallas_call(
        kernel,
        out_shape=jax.ShapeDtypeStruct((T2 * N2, H2), jnp.float32),
        grid_spec=pltpu.PrefetchScalarGridSpec(
            num_scalar_prefetch=0,
            grid=(1,),
            in_specs=[
                pl.BlockSpec((T1 * N1, F), lambda i: (0, 0)),
                pl.BlockSpec(params1["w_ih"].shape, lambda i: (0, 0)),
                pl.BlockSpec(params1["w_hh"].shape, lambda i: (0, 0)),
                pl.BlockSpec(params1["b"].shape, lambda i: (0, 0)),
                pl.BlockSpec(perm.shape, lambda i: (0, 0)),
                pl.BlockSpec(params2["w_ih"].shape, lambda i: (0, 0)),
                pl.BlockSpec(params2["w_hh"].shape, lambda i: (0, 0)),
                pl.BlockSpec(params2["b"].shape, lambda i: (0, 0)),
            ],
            out_specs=pl.BlockSpec((T2 * N2, H2), lambda i: (0, 0)),
        ),
        compiler_params=pltpu.CompilerParams(
            dimension_semantics=("arbitrary",)),
    )(x1, params1["w_ih"], params1["w_hh"], params1["b"],
      perm, params2["w_ih"], params2["w_hh"], params2["b"])

    # feature_map[b, k, hp, wp] = out2d[hp*N2 + wp*B + b, k]  -> (B, 2H, Hp, Wp)
    return out2d.reshape(Hp, Wp, B, H2).transpose(2, 3, 0, 1)


# ----------------------------------------------------------------------------
# Parameter init: xavier-uniform weights (module's apply() override), PyTorch
# default uniform biases, with b_ih + b_hh folded.  Direction packing done once:
# W_ih lane-concat, W_hh block-diagonal, biases lane-concat.
# ----------------------------------------------------------------------------
def init_params(key, in_dim, hidden):
    ks = jax.random.split(key, 8)

    def xavier(k, out_d, in_d):
        bound = (6.0 / (in_d + out_d)) ** 0.5
        # torch weight shape is (out_d, in_d); store transposed for x @ W.
        return jax.random.uniform(k, (out_d, in_d), jnp.float32, -bound, bound).T

    stdv = 1.0 / (hidden ** 0.5)

    def bias(k):
        return jax.random.uniform(k, (1, hidden), jnp.float32, -stdv, stdv)

    wih_f = xavier(ks[0], hidden, in_dim)
    whh_f = xavier(ks[1], hidden, hidden)
    b_f = bias(ks[2]) + bias(ks[3])                  # b_ih + b_hh folded
    wih_b = xavier(ks[4], hidden, in_dim)
    whh_b = xavier(ks[5], hidden, hidden)
    b_b = bias(ks[6]) + bias(ks[7])

    def block_diag(a, b):
        ra, ca = a.shape
        rb, cb = b.shape
        top = jnp.concatenate([a, jnp.zeros((ra, cb), a.dtype)], axis=1)
        bot = jnp.concatenate([jnp.zeros((rb, ca), b.dtype), b], axis=1)
        return jnp.concatenate([top, bot], axis=0)

    return dict(
        w_ih=jnp.concatenate([wih_f, wih_b], axis=1),   # (in_dim, 2H) [fwd | bwd]
        w_hh=block_diag(whh_f, whh_b),                  # (2H, 2H) block-diagonal
        b=jnp.concatenate([b_f, b_b], axis=1),          # (1, 2H)
    )


if __name__ == "__main__":
    key = jax.random.PRNGKey(0)
    kx, k1, k2 = jax.random.split(key, 3)

    B, C, H, W = 2, 3, 16, 16            # channel_size=3 (module default)
    x = jax.random.normal(kx, (B, C, H, W), jnp.float32)

    F = C * WS * WS
    p1 = init_params(k1, F, HIDDEN)             # firstVRNN : input = ws*ws*C
    p2 = init_params(k2, 2 * HIDDEN, HIDDEN)    # secondHRNN: input = 2*hidden

    fwd = jax.jit(lambda xx: renet_forward(xx, p1, p2))
    out = fwd(x)
    jax.block_until_ready(out)

    assert out.shape == (B, 2 * HIDDEN, H // WS, W // WS), out.shape
    assert out.dtype == jnp.float32
    print("KERNEL_OK")
</pallas_src>

<mosaic_0001>
module attributes {stable_mosaic.version = 11 : i64} {
  func.func @_renet_fused_kernel(%arg0: i32, %arg1: memref<128x12xf32, #tpu.memory_space<vmem>>, %arg2: memref<12x64xf32, #tpu.memory_space<vmem>>, %arg3: memref<64x64xf32, #tpu.memory_space<vmem>>, %arg4: memref<1x64xf32, #tpu.memory_space<vmem>>, %arg5: memref<128x128xf32, #tpu.memory_space<vmem>>, %arg6: memref<64x64xf32, #tpu.memory_space<vmem>>, %arg7: memref<64x64xf32, #tpu.memory_space<vmem>>, %arg8: memref<1x64xf32, #tpu.memory_space<vmem>>, %arg9: memref<128x64xf32, #tpu.memory_space<vmem>>) attributes {dimension_semantics = [#tpu.dimension_semantics<arbitrary>], iteration_bounds = array<i64: 1>, scalar_prefetch = 0 : i64, scratch_operands = 0 : i64, tpu.core_type = #tpu.core_type<tc>, window_params = [{pipeline_mode = #tpu.pipeline_mode<synchronous>, transform_indices = @transform_0, window_bounds = array<i64: 128, 12>}, {pipeline_mode = #tpu.pipeline_mode<synchronous>, transform_indices = @transform_1, window_bounds = array<i64: 12, 64>}, {pipeline_mode = #tpu.pipeline_mode<synchronous>, transform_indices = @transform_2, window_bounds = array<i64: 64, 64>}, {pipeline_mode = #tpu.pipeline_mode<synchronous>, transform_indices = @transform_3, window_bounds = array<i64: 1, 64>}, {pipeline_mode = #tpu.pipeline_mode<synchronous>, transform_indices = @transform_4, window_bounds = array<i64: 128, 128>}, {pipeline_mode = #tpu.pipeline_mode<synchronous>, transform_indices = @transform_5, window_bounds = array<i64: 64, 64>}, {pipeline_mode = #tpu.pipeline_mode<synchronous>, transform_indices = @transform_6, window_bounds = array<i64: 64, 64>}, {pipeline_mode = #tpu.pipeline_mode<synchronous>, transform_indices = @transform_7, window_bounds = array<i64: 1, 64>}, {pipeline_mode = #tpu.pipeline_mode<synchronous>, transform_indices = @transform_8, window_bounds = array<i64: 128, 64>}]} {
    %0 = tpu.iota {dimensions = array<i32: 1>} : vector<16x64xi32>
    %c32_i32 = arith.constant 32 : i32
    %1 = vector.broadcast %c32_i32 : i32 to vector<16x64xi32>
    %2 = arith.cmpi slt, %0, %1 : vector<16x64xi32>
    %3 = tpu.iota {dimensions = array<i32: 1>} : vector<16x64xi32>
    %c32_i32_0 = arith.constant 32 : i32
    %4 = vector.broadcast %c32_i32_0 : i32 to vector<16x64xi32>
    %5 = arith.cmpi slt, %3, %4 : vector<16x64xi32>
    %c0 = arith.constant 0 : index
    %c0_1 = arith.constant 0 : index
    %6 = vector.load %arg1[%c0, %c0_1] : memref<128x12xf32, #tpu.memory_space<vmem>>, vector<128x12xf32>
    %c0_2 = arith.constant 0 : index
    %c0_3 = arith.constant 0 : index
    %7 = vector.load %arg2[%c0_2, %c0_3] : memref<12x64xf32, #tpu.memory_space<vmem>>, vector<12x64xf32>
    %cst = arith.constant dense<0.000000e+00> : vector<128x64xf32>
    %8 = tpu.matmul %6, %7, %cst {dimension_numbers = #tpu.dot_dimension_numbers<[1], [0], [0], [1], [0, 0, 1, 1], [], []>} : vector<128x12xf32>, vector<12x64xf32>, vector<128x64xf32> -> vector<128x64xf32>
    %c0_4 = arith.constant 0 : index
    %c0_5 = arith.constant 0 : index
    %9 = vector.load %arg4[%c0_4, %c0_5] : memref<1x64xf32, #tpu.memory_space<vmem>>, vector<1x64xf32>
    %10 = vector.broadcast %9 : vector<1x64xf32> to vector<128x64xf32>
    %11 = arith.addf %8, %10 : vector<128x64xf32>
    %c0_6 = arith.constant 0 : index
    %c0_7 = arith.constant 0 : index
    %12 = vector.load %arg3[%c0_6, %c0_7] : memref<64x64xf32, #tpu.memory_space<vmem>>, vector<64x64xf32>
    %cst_8 = arith.constant 0.000000e+00 : f32
    %13 = vector.broadcast %cst_8 : f32 to vector<16x64xf32>
    %14 = vector.extract_strided_slice %11 {offsets = [0, 0], sizes = [16, 64], strides = [1, 1]} : vector<128x64xf32> to vector<16x64xf32>
    %15 = vector.extract_strided_slice %11 {offsets = [112, 0], sizes = [16, 64], strides = [1, 1]} : vector<128x64xf32> to vector<16x64xf32>
    %16 = arith.select %2, %14, %15 : vector<16x64xi1>, vector<16x64xf32>
    %cst_9 = arith.constant dense<0.000000e+00> : vector<16x64xf32>
    %17 = tpu.matmul %13, %12, %cst_9 {dimension_numbers = #tpu.dot_dimension_numbers<[1], [0], [0], [1], [0, 0, 1, 1], [], []>} : vector<16x64xf32>, vector<64x64xf32>, vector<16x64xf32> -> vector<16x64xf32>
    %18 = arith.addf %16, %17 : vector<16x64xf32>
    %19 = math.tanh %18 : vector<16x64xf32>
    %20 = vector.extract_strided_slice %11 {offsets = [16, 0], sizes = [16, 64], strides = [1, 1]} : vector<128x64xf32> to vector<16x64xf32>
    %21 = vector.extract_strided_slice %11 {offsets = [96, 0], sizes = [16, 64], strides = [1, 1]} : vector<128x64xf32> to vector<16x64xf32>
    %22 = arith.select %2, %20, %21 : vector<16x64xi1>, vector<16x64xf32>
    %cst_10 = arith.constant dense<0.000000e+00> : vector<16x64xf32>
    %23 = tpu.matmul %19, %12, %cst_10 {dimension_numbers = #tpu.dot_dimension_numbers<[1], [0], [0], [1], [0, 0, 1, 1], [], []>} : vector<16x64xf32>, vector<64x64xf32>, vector<16x64xf32> -> vector<16x64xf32>
    %24 = arith.addf %22, %23 : vector<16x64xf32>
    %25 = math.tanh %24 : vector<16x64xf32>
    %26 = vector.extract_strided_slice %11 {offsets = [32, 0], sizes = [16, 64], strides = [1, 1]} : vector<128x64xf32> to vector<16x64xf32>
    %27 = vector.extract_strided_slice %11 {offsets = [80, 0], sizes = [16, 64], strides = [1, 1]} : vector<128x64xf32> to vector<16x64xf32>
    %28 = arith.select %2, %26, %27 : vector<16x64xi1>, vector<16x64xf32>
    %cst_11 = arith.constant dense<0.000000e+00> : vector<16x64xf32>
    %29 = tpu.matmul %25, %12, %cst_11 {dimension_numbers = #tpu.dot_dimension_numbers<[1], [0], [0], [1], [0, 0, 1, 1], [], []>} : vector<16x64xf32>, vector<64x64xf32>, vector<16x64xf32> -> vector<16x64xf32>
    %30 = arith.addf %28, %29 : vector<16x64xf32>
    %31 = math.tanh %30 : vector<16x64xf32>
    %32 = vector.extract_strided_slice %11 {offsets = [48, 0], sizes = [16, 64], strides = [1, 1]} : vector<128x64xf32> to vector<16x64xf32>
    %33 = vector.extract_strided_slice %11 {offsets = [64, 0], sizes = [16, 64], strides = [1, 1]} : vector<128x64xf32> to vector<16x64xf32>
    %34 = arith.select %2, %32, %33 : vector<16x64xi1>, vector<16x64xf32>
    %cst_12 = arith.constant dense<0.000000e+00> : vector<16x64xf32>
    %35 = tpu.matmul %31, %12, %cst_12 {dimension_numbers = #tpu.dot_dimension_numbers<[1], [0], [0], [1], [0, 0, 1, 1], [], []>} : vector<16x64xf32>, vector<64x64xf32>, vector<16x64xf32> -> vector<16x64xf32>
    %36 = arith.addf %34, %35 : vector<16x64xf32>
    %37 = math.tanh %36 : vector<16x64xf32>
    %38 = vector.extract_strided_slice %11 {offsets = [64, 0], sizes = [16, 64], strides = [1, 1]} : vector<128x64xf32> to vector<16x64xf32>
    %39 = vector.extract_strided_slice %11 {offsets = [48, 0], sizes = [16, 64], strides = [1, 1]} : vector<128x64xf32> to vector<16x64xf32>
    %40 = arith.select %2, %38, %39 : vector<16x64xi1>, vector<16x64xf32>
    %cst_13 = arith.constant dense<0.000000e+00> : vector<16x64xf32>
    %41 = tpu.matmul %37, %12, %cst_13 {dimension_numbers = #tpu.dot_dimension_numbers<[1], [0], [0], [1], [0, 0, 1, 1], [], []>} : vector<16x64xf32>, vector<64x64xf32>, vector<16x64xf32> -> vector<16x64xf32>
    %42 = arith.addf %40, %41 : vector<16x64xf32>
    %43 = math.tanh %42 : vector<16x64xf32>
    %44 = vector.extract_strided_slice %11 {offsets = [80, 0], sizes = [16, 64], strides = [1, 1]} : vector<128x64xf32> to vector<16x64xf32>
    %45 = vector.extract_strided_slice %11 {offsets = [32, 0], sizes = [16, 64], strides = [1, 1]} : vector<128x64xf32> to vector<16x64xf32>
    %46 = arith.select %2, %44, %45 : vector<16x64xi1>, vector<16x64xf32>
    %cst_14 = arith.constant dense<0.000000e+00> : vector<16x64xf32>
    %47 = tpu.matmul %43, %12, %cst_14 {dimension_numbers = #tpu.dot_dimension_numbers<[1], [0], [0], [1], [0, 0, 1, 1], [], []>} : vector<16x64xf32>, vector<64x64xf32>, vector<16x64xf32> -> vector<16x64xf32>
    %48 = arith.addf %46, %47 : vector<16x64xf32>
    %49 = math.tanh %48 : vector<16x64xf32>
    %50 = vector.extract_strided_slice %11 {offsets = [96, 0], sizes = [16, 64], strides = [1, 1]} : vector<128x64xf32> to vector<16x64xf32>
    %51 = vector.extract_strided_slice %11 {offsets = [16, 0], sizes = [16, 64], strides = [1, 1]} : vector<128x64xf32> to vector<16x64xf32>
    %52 = arith.select %2, %50, %51 : vector<16x64xi1>, vector<16x64xf32>
    %cst_15 = arith.constant dense<0.000000e+00> : vector<16x64xf32>
    %53 = tpu.matmul %49, %12, %cst_15 {dimension_numbers = #tpu.dot_dimension_numbers<[1], [0], [0], [1], [0, 0, 1, 1], [], []>} : vector<16x64xf32>, vector<64x64xf32>, vector<16x64xf32> -> vector<16x64xf32>
    %54 = arith.addf %52, %53 : vector<16x64xf32>
    %55 = math.tanh %54 : vector<16x64xf32>
    %56 = vector.extract_strided_slice %11 {offsets = [112, 0], sizes = [16, 64], strides = [1, 1]} : vector<128x64xf32> to vector<16x64xf32>
    %57 = vector.extract_strided_slice %11 {offsets = [0, 0], sizes = [16, 64], strides = [1, 1]} : vector<128x64xf32> to vector<16x64xf32>
    %58 = arith.select %2, %56, %57 : vector<16x64xi1>, vector<16x64xf32>
    %cst_16 = arith.constant dense<0.000000e+00> : vector<16x64xf32>
    %59 = tpu.matmul %55, %12, %cst_16 {dimension_numbers = #tpu.dot_dimension_numbers<[1], [0], [0], [1], [0, 0, 1, 1], [], []>} : vector<16x64xf32>, vector<64x64xf32>, vector<16x64xf32> -> vector<16x64xf32>
    %60 = arith.addf %58, %59 : vector<16x64xf32>
    %61 = math.tanh %60 : vector<16x64xf32>
    %62 = arith.select %2, %19, %61 : vector<16x64xi1>, vector<16x64xf32>
    %63 = arith.select %2, %25, %55 : vector<16x64xi1>, vector<16x64xf32>
    %64 = arith.select %2, %31, %49 : vector<16x64xi1>, vector<16x64xf32>
    %65 = arith.select %2, %37, %43 : vector<16x64xi1>, vector<16x64xf32>
    %66 = arith.select %2, %43, %37 : vector<16x64xi1>, vector<16x64xf32>
    %67 = arith.select %2, %49, %31 : vector<16x64xi1>, vector<16x64xf32>
    %68 = arith.select %2, %55, %25 : vector<16x64xi1>, vector<16x64xf32>
    %69 = arith.select %2, %61, %19 : vector<16x64xi1>, vector<16x64xf32>
    %70 = tpu.concatenate %62, %63, %64, %65, %66, %67, %68, %69 in 0 : vector<16x64xf32>, vector<16x64xf32>, vector<16x64xf32>, vector<16x64xf32>, vector<16x64xf32>, vector<16x64xf32>, vector<16x64xf32>, vector<16x64xf32> -> vector<128x64xf32>
    %c0_17 = arith.constant 0 : index
    %c0_18 = arith.constant 0 : index
    %71 = vector.load %arg5[%c0_17, %c0_18] : memref<128x128xf32, #tpu.memory_space<vmem>>, vector<128x128xf32>
    %c0_19 = arith.constant 0 : index
    %c0_20 = arith.constant 0 : index
    %72 = vector.load %arg6[%c0_19, %c0_20] : memref<64x64xf32, #tpu.memory_space<vmem>>, vector<64x64xf32>
    %cst_21 = arith.constant dense<0.000000e+00> : vector<128x64xf32>
    %73 = tpu.matmul %70, %72, %cst_21 {dimension_numbers = #tpu.dot_dimension_numbers<[1], [0], [0], [1], [0, 0, 1, 1], [], []>} : vector<128x64xf32>, vector<64x64xf32>, vector<128x64xf32> -> vector<128x64xf32>
    %cst_22 = arith.constant dense<0.000000e+00> : vector<128x64xf32>
    %74 = tpu.matmul %71, %73, %cst_22 {dimension_numbers = #tpu.dot_dimension_numbers<[1], [0], [0], [1], [0, 0, 1, 1], [], []>} : vector<128x128xf32>, vector<128x64xf32>, vector<128x64xf32> -> vector<128x64xf32>
    %c0_23 = arith.constant 0 : index
    %c0_24 = arith.constant 0 : index
    %75 = vector.load %arg8[%c0_23, %c0_24] : memref<1x64xf32, #tpu.memory_space<vmem>>, vector<1x64xf32>
    %76 = vector.broadcast %75 : vector<1x64xf32> to vector<128x64xf32>
    %77 = arith.addf %74, %76 : vector<128x64xf32>
    %c0_25 = arith.constant 0 : index
    %c0_26 = arith.constant 0 : index
    %78 = vector.load %arg7[%c0_25, %c0_26] : memref<64x64xf32, #tpu.memory_space<vmem>>, vector<64x64xf32>
    %cst_27 = arith.constant 0.000000e+00 : f32
    %79 = vector.broadcast %cst_27 : f32 to vector<16x64xf32>
    %80 = vector.extract_strided_slice %77 {offsets = [0, 0], sizes = [16, 64], strides = [1, 1]} : vector<128x64xf32> to vector<16x64xf32>
    %81 = vector.extract_strided_slice %77 {offsets = [112, 0], sizes = [16, 64], strides = [1, 1]} : vector<128x64xf32> to vector<16x64xf32>
    %82 = arith.select %5, %80, %81 : vector<16x64xi1>, vector<16x64xf32>
    %cst_28 = arith.constant dense<0.000000e+00> : vector<16x64xf32>
    %83 = tpu.matmul %79, %78, %cst_28 {dimension_numbers = #tpu.dot_dimension_numbers<[1], [0], [0], [1], [0, 0, 1, 1], [], []>} : vector<16x64xf32>, vector<64x64xf32>, vector<16x64xf32> -> vector<16x64xf32>
    %84 = arith.addf %82, %83 : vector<16x64xf32>
    %85 = math.tanh %84 : vector<16x64xf32>
    %86 = vector.extract_strided_slice %77 {offsets = [16, 0], sizes = [16, 64], strides = [1, 1]} : vector<128x64xf32> to vector<16x64xf32>
    %87 = vector.extract_strided_slice %77 {offsets = [96, 0], sizes = [16, 64], strides = [1, 1]} : vector<128x64xf32> to vector<16x64xf32>
    %88 = arith.select %5, %86, %87 : vector<16x64xi1>, vector<16x64xf32>
    %cst_29 = arith.constant dense<0.000000e+00> : vector<16x64xf32>
    %89 = tpu.matmul %85, %78, %cst_29 {dimension_numbers = #tpu.dot_dimension_numbers<[1], [0], [0], [1], [0, 0, 1, 1], [], []>} : vector<16x64xf32>, vector<64x64xf32>, vector<16x64xf32> -> vector<16x64xf32>
    %90 = arith.addf %88, %89 : vector<16x64xf32>
    %91 = math.tanh %90 : vector<16x64xf32>
    %92 = vector.extract_strided_slice %77 {offsets = [32, 0], sizes = [16, 64], strides = [1, 1]} : vector<128x64xf32> to vector<16x64xf32>
    %93 = vector.extract_strided_slice %77 {offsets = [80, 0], sizes = [16, 64], strides = [1, 1]} : vector<128x64xf32> to vector<16x64xf32>
    %94 = arith.select %5, %92, %93 : vector<16x64xi1>, vector<16x64xf32>
    %cst_30 = arith.constant dense<0.000000e+00> : vector<16x64xf32>
    %95 = tpu.matmul %91, %78, %cst_30 {dimension_numbers = #tpu.dot_dimension_numbers<[1], [0], [0], [1], [0, 0, 1, 1], [], []>} : vector<16x64xf32>, vector<64x64xf32>, vector<16x64xf32> -> vector<16x64xf32>
    %96 = arith.addf %94, %95 : vector<16x64xf32>
    %97 = math.tanh %96 : vector<16x64xf32>
    %98 = vector.extract_strided_slice %77 {offsets = [48, 0], sizes = [16, 64], strides = [1, 1]} : vector<128x64xf32> to vector<16x64xf32>
    %99 = vector.extract_strided_slice %77 {offsets = [64, 0], sizes = [16, 64], strides = [1, 1]} : vector<128x64xf32> to vector<16x64xf32>
    %100 = arith.select %5, %98, %99 : vector<16x64xi1>, vector<16x64xf32>
    %cst_31 = arith.constant dense<0.000000e+00> : vector<16x64xf32>
    %101 = tpu.matmul %97, %78, %cst_31 {dimension_numbers = #tpu.dot_dimension_numbers<[1], [0], [0], [1], [0, 0, 1, 1], [], []>} : vector<16x64xf32>, vector<64x64xf32>, vector<16x64xf32> -> vector<16x64xf32>
    %102 = arith.addf %100, %101 : vector<16x64xf32>
    %103 = math.tanh %102 : vector<16x64xf32>
    %104 = vector.extract_strided_slice %77 {offsets = [64, 0], sizes = [16, 64], strides = [1, 1]} : vector<128x64xf32> to vector<16x64xf32>
    %105 = vector.extract_strided_slice %77 {offsets = [48, 0], sizes = [16, 64], strides = [1, 1]} : vector<128x64xf32> to vector<16x64xf32>
    %106 = arith.select %5, %104, %105 : vector<16x64xi1>, vector<16x64xf32>
    %cst_32 = arith.constant dense<0.000000e+00> : vector<16x64xf32>
    %107 = tpu.matmul %103, %78, %cst_32 {dimension_numbers = #tpu.dot_dimension_numbers<[1], [0], [0], [1], [0, 0, 1, 1], [], []>} : vector<16x64xf32>, vector<64x64xf32>, vector<16x64xf32> -> vector<16x64xf32>
    %108 = arith.addf %106, %107 : vector<16x64xf32>
    %109 = math.tanh %108 : vector<16x64xf32>
    %110 = vector.extract_strided_slice %77 {offsets = [80, 0], sizes = [16, 64], strides = [1, 1]} : vector<128x64xf32> to vector<16x64xf32>
    %111 = vector.extract_strided_slice %77 {offsets = [32, 0], sizes = [16, 64], strides = [1, 1]} : vector<128x64xf32> to vector<16x64xf32>
    %112 = arith.select %5, %110, %111 : vector<16x64xi1>, vector<16x64xf32>
    %cst_33 = arith.constant dense<0.000000e+00> : vector<16x64xf32>
    %113 = tpu.matmul %109, %78, %cst_33 {dimension_numbers = #tpu.dot_dimension_numbers<[1], [0], [0], [1], [0, 0, 1, 1], [], []>} : vector<16x64xf32>, vector<64x64xf32>, vector<16x64xf32> -> vector<16x64xf32>
    %114 = arith.addf %112, %113 : vector<16x64xf32>
    %115 = math.tanh %114 : vector<16x64xf32>
    %116 = vector.extract_strided_slice %77 {offsets = [96, 0], sizes = [16, 64], strides = [1, 1]} : vector<128x64xf32> to vector<16x64xf32>
    %117 = vector.extract_strided_slice %77 {offsets = [16, 0], sizes = [16, 64], strides = [1, 1]} : vector<128x64xf32> to vector<16x64xf32>
    %118 = arith.select %5, %116, %117 : vector<16x64xi1>, vector<16x64xf32>
    %cst_34 = arith.constant dense<0.000000e+00> : vector<16x64xf32>
    %119 = tpu.matmul %115, %78, %cst_34 {dimension_numbers = #tpu.dot_dimension_numbers<[1], [0], [0], [1], [0, 0, 1, 1], [], []>} : vector<16x64xf32>, vector<64x64xf32>, vector<16x64xf32> -> vector<16x64xf32>
    %120 = arith.addf %118, %119 : vector<16x64xf32>
    %121 = math.tanh %120 : vector<16x64xf32>
    %122 = vector.extract_strided_slice %77 {offsets = [112, 0], sizes = [16, 64], strides = [1, 1]} : vector<128x64xf32> to vector<16x64xf32>
    %123 = vector.extract_strided_slice %77 {offsets = [0, 0], sizes = [16, 64], strides = [1, 1]} : vector<128x64xf32> to vector<16x64xf32>
    %124 = arith.select %5, %122, %123 : vector<16x64xi1>, vector<16x64xf32>
    %cst_35 = arith.constant dense<0.000000e+00> : vector<16x64xf32>
    %125 = tpu.matmul %121, %78, %cst_35 {dimension_numbers = #tpu.dot_dimension_numbers<[1], [0], [0], [1], [0, 0, 1, 1], [], []>} : vector<16x64xf32>, vector<64x64xf32>, vector<16x64xf32> -> vector<16x64xf32>
    %126 = arith.addf %124, %125 : vector<16x64xf32>
    %127 = math.tanh %126 : vector<16x64xf32>
    %128 = arith.select %5, %85, %127 : vector<16x64xi1>, vector<16x64xf32>
    %129 = arith.select %5, %91, %121 : vector<16x64xi1>, vector<16x64xf32>
    %130 = arith.select %5, %97, %115 : vector<16x64xi1>, vector<16x64xf32>
    %131 = arith.select %5, %103, %109 : vector<16x64xi1>, vector<16x64xf32>
    %132 = arith.select %5, %109, %103 : vector<16x64xi1>, vector<16x64xf32>
    %133 = arith.select %5, %115, %97 : vector<16x64xi1>, vector<16x64xf32>
    %134 = arith.select %5, %121, %91 : vector<16x64xi1>, vector<16x64xf32>
    %135 = arith.select %5, %127, %85 : vector<16x64xi1>, vector<16x64xf32>
    %136 = tpu.concatenate %128, %129, %130, %131, %132, %133, %134, %135 in 0 : vector<16x64xf32>, vector<16x64xf32>, vector<16x64xf32>, vector<16x64xf32>, vector<16x64xf32>, vector<16x64xf32>, vector<16x64xf32>, vector<16x64xf32> -> vector<128x64xf32>
    %c0_36 = arith.constant 0 : index
    %c0_37 = arith.constant 0 : index
    %137 = vector.load %arg9[%c0_36, %c0_37] : memref<128x64xf32, #tpu.memory_space<vmem>>, vector<128x64xf32>
    tpu.vector_store %arg9[%c0_36, %c0_37], %136 {strides = array<i32>} : memref<128x64xf32, #tpu.memory_space<vmem>>, vector<128x64xf32>,
    return
  }
  func.func @transform_0(%arg0: i32) -> (i32, i32) {
    %c0_i32 = arith.constant 0 : i32
    %c0_i32_0 = arith.constant 0 : i32
    %c0_i32_1 = arith.constant 0 : i32
    return %c0_i32, %c0_i32_0 : i32, i32
  }
  func.func @transform_1(%arg0: i32) -> (i32, i32) {
    %c0_i32 = arith.constant 0 : i32
    %c0_i32_0 = arith.constant 0 : i32
    %c0_i32_1 = arith.constant 0 : i32
    return %c0_i32, %c0_i32_0 : i32, i32
  }
  func.func @transform_2(%arg0: i32) -> (i32, i32) {
    %c0_i32 = arith.constant 0 : i32
    %c0_i32_0 = arith.constant 0 : i32
    %c0_i32_1 = arith.constant 0 : i32
    return %c0_i32, %c0_i32_0 : i32, i32
  }
  func.func @transform_3(%arg0: i32) -> (i32, i32) {
    %c0_i32 = arith.constant 0 : i32
    %c0_i32_0 = arith.constant 0 : i32
    %c0_i32_1 = arith.constant 0 : i32
    return %c0_i32, %c0_i32_0 : i32, i32
  }
  func.func @transform_4(%arg0: i32) -> (i32, i32) {
    %c0_i32 = arith.constant 0 : i32
    %c0_i32_0 = arith.constant 0 : i32
    %c0_i32_1 = arith.constant 0 : i32
    return %c0_i32, %c0_i32_0 : i32, i32
  }
  func.func @transform_5(%arg0: i32) -> (i32, i32) {
    %c0_i32 = arith.constant 0 : i32
    %c0_i32_0 = arith.constant 0 : i32
    %c0_i32_1 = arith.constant 0 : i32
    return %c0_i32, %c0_i32_0 : i32, i32
  }
  func.func @transform_6(%arg0: i32) -> (i32, i32) {
    %c0_i32 = arith.constant 0 : i32
    %c0_i32_0 = arith.constant 0 : i32
    %c0_i32_1 = arith.constant 0 : i32
    return %c0_i32, %c0_i32_0 : i32, i32
  }
  func.func @transform_7(%arg0: i32) -> (i32, i32) {
    %c0_i32 = arith.constant 0 : i32
    %c0_i32_0 = arith.constant 0 : i32
    %c0_i32_1 = arith.constant 0 : i32
    return %c0_i32, %c0_i32_0 : i32, i32
  }
  func.func @transform_8(%arg0: i32) -> (i32, i32) {
    %c0_i32 = arith.constant 0 : i32
    %c0_i32_0 = arith.constant 0 : i32
    %c0_i32_1 = arith.constant 0 : i32
    return %c0_i32, %c0_i32_0 : i32, i32
  }
}

</mosaic_0001>

<llo_original>
// kernel: _lambda_.1
$region0: #{_lambda_.1}
  #allocation0 [shape = 'u32[]', space=smem, size = 0x4, offset = 0x4, fixed_abs, tag = 'smem constant byte address 0x4 - core index']
  #allocation1 [shape = 'u32[144,128]{1,0:T(1,128)}', space=vmem, size = 0x12000, scoped, tag = 'internal scratch']
  %s0 = inlined_call_operand.vmem [shape: f32[128,12], index: 0, kind: input, shape index: {}]
  %s1 = inlined_call_operand.vmem [shape: f32[12,64], index: 1, kind: input, shape index: {}]
  %s2 = inlined_call_operand.vmem [shape: f32[64,64], index: 2, kind: input, shape index: {}]
  %s3 = inlined_call_operand.vmem [shape: f32[1,64], index: 3, kind: input, shape index: {}]
  %s4 = inlined_call_operand.vmem [shape: f32[128,128], index: 4, kind: input, shape index: {}]
  %s5 = inlined_call_operand.vmem [shape: f32[64,64], index: 5, kind: input, shape index: {}]
  %s6 = inlined_call_operand.vmem [shape: f32[64,64], index: 6, kind: input, shape index: {}]
  %s7 = inlined_call_operand.vmem [shape: f32[1,64], index: 7, kind: input, shape index: {}]
  %s8 = inlined_call_operand.vmem [shape: f32[128,64], index: 8, kind: output, shape index: {}]
  %s9 = sld [smem:[#allocation0]]
  $region42: #{_lambda_.1} parent=0
    _
  %s11 = ssub.s32 1, %s9
  %s12 = scalar_select 0, %s11, %s9
  // Predicated region
  $region2: #{_lambda_.1} parent=0 // pred_check
    _
  $region3: #{_lambda_.1} parent=0 // pred_check_branch
    %14 = sbr.rel (0) target = $region5
  $region4: #{_lambda_.1} parent=0 // pred_region
    _
  $region5: #{_lambda_.1} parent=0 // pred_fallthru
    _
  // Predicated region
  $region6: #{_lambda_.1} parent=0 // pred_check
    _
  $region7: #{_lambda_.1} parent=0 // pred_check_branch
    %16 = sbr.rel (0) target = $region9
  $region8: #{_lambda_.1} parent=0 // pred_region
    _
  $region9: #{_lambda_.1} parent=0 // pred_fallthru
    _
  // Predicated region
  $region10: #{_lambda_.1} parent=0 // pred_check
    _
  $region11: #{_lambda_.1} parent=0 // pred_check_branch
    %18 = sbr.rel (0) target = $region13
  $region12: #{_lambda_.1} parent=0 // pred_region
    _
  $region13: #{_lambda_.1} parent=0 // pred_fallthru
    _
  // Predicated region
  $region14: #{_lambda_.1} parent=0 // pred_check
    _
  $region15: #{_lambda_.1} parent=0 // pred_check_branch
    %20 = sbr.rel (0) target = $region17
  $region16: #{_lambda_.1} parent=0 // pred_region
    _
  $region17: #{_lambda_.1} parent=0 // pred_fallthru
    _
  // Predicated region
  $region18: #{_lambda_.1} parent=0 // pred_check
    _
  $region19: #{_lambda_.1} parent=0 // pred_check_branch
    %22 = sbr.rel (0) target = $region21
  $region20: #{_lambda_.1} parent=0 // pred_region
    _
  $region21: #{_lambda_.1} parent=0 // pred_fallthru
    _
  // Predicated region
  $region22: #{_lambda_.1} parent=0 // pred_check
    _
  $region23: #{_lambda_.1} parent=0 // pred_check_branch
    %24 = sbr.rel (0) target = $region25
  $region24: #{_lambda_.1} parent=0 // pred_region
    _
  $region25: #{_lambda_.1} parent=0 // pred_fallthru
    _
  // Predicated region
  $region26: #{_lambda_.1} parent=0 // pred_check
    _
  $region27: #{_lambda_.1} parent=0 // pred_check_branch
    %26 = sbr.rel (0) target = $region29
  $region28: #{_lambda_.1} parent=0 // pred_region
    _
  $region29: #{_lambda_.1} parent=0 // pred_fallthru
    _
  // Predicated region
  $region30: #{_lambda_.1} parent=0 // pred_check
    _
  $region31: #{_lambda_.1} parent=0 // pred_check_branch
    %28 = sbr.rel (0) target = $region33
  $region32: #{_lambda_.1} parent=0 // pred_region
    _
  $region33: #{_lambda_.1} parent=0 // pred_fallthru
    _
  %v29 = vlaneseq
  %v30 = vand.u32 %v29, 127
  %vm31 = vcmp.lt.s32.totalorder %v30, 32
  %v32 = vld [vmem:[%s0] sm:$0xff]
  %v33 = vld [vmem:[%s0 + $0x8] sm:$0xff]
  %v34 = vld [vmem:[%s0 + $0x10] sm:$0xff]
  %v35 = vld [vmem:[%s0 + $0x18] sm:$0xff]
  %v36 = vld [vmem:[%s0 + $0x20] sm:$0xff]
  %v37 = vld [vmem:[%s0 + $0x28] sm:$0xff]
  %v38 = vld [vmem:[%s0 + $0x30] sm:$0xff]
  %v39 = vld [vmem:[%s0 + $0x38] sm:$0xff]
  %v40 = vld [vmem:[%s0 + $0x40] sm:$0xff]
  %v41 = vld [vmem:[%s0 + $0x48] sm:$0xff]
  %v42 = vld [vmem:[%s0 + $0x50] sm:$0xff]
  %v43 = vld [vmem:[%s0 + $0x58] sm:$0xff]
  %v44 = vld [vmem:[%s0 + $0x60] sm:$0xff]
  %v45 = vld [vmem:[%s0 + $0x68] sm:$0xff]
  %v46 = vld [vmem:[%s0 + $0x70] sm:$0xff]
  %v47 = vld [vmem:[%s0 + $0x78] sm:$0xff]
  %v48 = vld [vmem:[%s1] sm:$0xff]
  %v49 = vld [vmem:[%s1 + $0x8] sm:$0xf]
  %v50 = vld [vmem:[%s3] sm:$0x1]
  %v52 = vlaneseq
  %v53 = vshrl.u32 %v52, 7
  %v54 = vsub.s32 0, %v53
  %v55 = vrot.slane %v50, %v54
  %vm57 = vcmask 97280
  %v59 = vsel %vm57, %v32, 0
  %v62 = vsel %vm57, %v33, 0
  %v65 = vsel %vm57, %v34, 0
  %v68 = vsel %vm57, %v35, 0
  %v71 = vsel %vm57, %v36, 0
  %v74 = vsel %vm57, %v37, 0
  %v77 = vsel %vm57, %v38, 0
  %v80 = vsel %vm57, %v39, 0
  %v83 = vsel %vm57, %v40, 0
  %v86 = vsel %vm57, %v41, 0
  %v89 = vsel %vm57, %v42, 0
  %v92 = vsel %vm57, %v43, 0
  %v95 = vsel %vm57, %v44, 0
  %v98 = vsel %vm57, %v45, 0
  %v101 = vsel %vm57, %v46, 0
  %v104 = vsel %vm57, %v47, 0
  %vm106 = vcmask 1043456
  %v108 = vsel %vm106, %v49, 0
  %110 = vmatprep.subr.mxu0 0.0
  %111 = vmatpush1.msra.mxu0 0.0
  %112 = vmatprep.subr.mxu0 0.0
  %113 = vmatpush1.msra.mxu0 0.0
  %114 = vmatprep.subr.mxu0 0.0
  %115 = vmatpush1.msra.mxu0 0.0
  %116 = vmatprep.subr.mxu0 0.0
  %117 = vmatpush1.msra.mxu0 0.0
  %118 = vmatprep.subr.mxu0 0.0
  %119 = vmatpush1.msra.mxu0 0.0
  %120 = vmatprep.subr.mxu0 0.0
  %121 = vmatpush1.msra.mxu0 0.0
  %122 = vmatprep.subr.mxu0 0.0
  %123 = vmatpush1.msra.mxu0 0.0
  %124 = vmatprep.subr.mxu0 0.0
  %125 = vmatpush1.msra.mxu0 0.0
  %126 = vmatprep.subr.mxu0 0.0
  %127 = vmatpush1.msra.mxu0 0.0
  %128 = vmatprep.subr.mxu0 0.0
  %129 = vmatpush1.msra.mxu0 0.0
  %130 = vmatprep.subr.mxu0 0.0
  %131 = vmatpush1.msra.mxu0 0.0
  %132 = vmatprep.subr.mxu0 0.0
  %133 = vmatpush1.msra.mxu0 0.0
  %134 = vmatprep.subr.mxu0 0.0
  %135 = vmatpush1.msra.mxu0 0.0
  %136 = vmatprep.subr.mxu0 0.0
  %137 = vmatpush1.msra.mxu0 0.0
  %138 = vmatprep.subr.mxu0 0.0
  %139 = vmatpush1.msra.mxu0 %v108
  %140 = vmatprep.subr.mxu0 0.0
  %141 = vmatpush1.msra.mxu0 %v48
  %142 = vmatprep.subr.mxu0 0.0
  %143 = vmatpush2.msra.mxu0 0.0
  %144 = vmatprep.subr.mxu0 0.0
  %145 = vmatpush2.msra.mxu0 0.0
  %146 = vmatprep.subr.mxu0 0.0
  %147 = vmatpush2.msra.mxu0 0.0
  %148 = vmatprep.subr.mxu0 0.0
  %149 = vmatpush2.msra.mxu0 0.0
  %150 = vmatprep.subr.mxu0 0.0
  %151 = vmatpush2.msra.mxu0 0.0
  %152 = vmatprep.subr.mxu0 0.0
  %153 = vmatpush2.msra.mxu0 0.0
  %154 = vmatprep.subr.mxu0 0.0
  %155 = vmatpush2.msra.mxu0 0.0
  %156 = vmatprep.subr.mxu0 0.0
  %157 = vmatpush2.msra.mxu0 0.0
  %158 = vmatprep.subr.mxu0 0.0
  %159 = vmatpush2.msra.mxu0 0.0
  %160 = vmatprep.subr.mxu0 0.0
  %161 = vmatpush2.msra.mxu0 0.0
  %162 = vmatprep.subr.mxu0 0.0
  %163 = vmatpush2.msra.mxu0 0.0
  %164 = vmatprep.subr.mxu0 0.0
  %165 = vmatpush2.msra.mxu0 0.0
  %166 = vmatprep.subr.mxu0 0.0
  %167 = vmatpush2.msra.mxu0 0.0
  %168 = vmatprep.subr.mxu0 0.0
  %169 = vmatpush2.msra.mxu0 0.0
  %170 = vmatprep.subr.mxu0 0.0
  %171 = vmatpush2.msra.mxu0 0.0
  %172 = vmatprep.subr.mxu0 0.0
  %173 = vmatpush2.msra.mxu0 0.0
  %174 = vmatprep.mubr.f32.mxu0 0.0
  %175 = vmatmul.mubr.f32.gmra.mxu0 %v59
  %v176 = vpop.f32.mrf.mxu0
  %v177 = vadd.f32 %v55, %v176
  %v178 = vpop.f32.mrf.mxu0
  %179 = vmatprep.mubr.f32.mxu0 0.0
  %180 = vmatmul.mubr.f32.gmra.mxu0 %v62
  %v181 = vpop.f32.mrf.mxu0
  %v182 = vadd.f32 %v55, %v181
  %v183 = vpop.f32.mrf.mxu0
  %184 = vmatprep.mubr.f32.mxu0 0.0
  %185 = vmatmul.mubr.f32.gmra.mxu0 %v65
  %v186 = vpop.f32.mrf.mxu0
  %v187 = vadd.f32 %v55, %v186
  %v188 = vpop.f32.mrf.mxu0
  %189 = vmatprep.mubr.f32.mxu0 0.0
  %190 = vmatmul.mubr.f32.gmra.mxu0 %v68
  %v191 = vpop.f32.mrf.mxu0
  %v192 = vadd.f32 %v55, %v191
  %v193 = vpop.f32.mrf.mxu0
  %194 = vmatprep.mubr.f32.mxu0 0.0
  %195 = vmatmul.mubr.f32.gmra.mxu0 %v71
  %v196 = vpop.f32.mrf.mxu0
  %v197 = vadd.f32 %v55, %v196
  %v198 = vpop.f32.mrf.mxu0
  %199 = vmatprep.mubr.f32.mxu0 0.0
  %200 = vmatmul.mubr.f32.gmra.mxu0 %v74
  %v201 = vpop.f32.mrf.mxu0
  %v202 = vadd.f32 %v55, %v201
  %v203 = vpop.f32.mrf.mxu0
  %204 = vmatprep.mubr.f32.mxu0 0.0
  %205 = vmatmul.mubr.f32.gmra.mxu0 %v77
  %v206 = vpop.f32.mrf.mxu0
  %v207 = vadd.f32 %v55, %v206
  %v208 = vpop.f32.mrf.mxu0
  %209 = vmatprep.mubr.f32.mxu0 0.0
  %210 = vmatmul.mubr.f32.gmra.mxu0 %v80
  %v211 = vpop.f32.mrf.mxu0
  %v212 = vadd.f32 %v55, %v211
  %v213 = vpop.f32.mrf.mxu0
  %214 = vmatprep.mubr.f32.mxu0 0.0
  %215 = vmatmul.mubr.f32.gmra.mxu0 %v83
  %v216 = vpop.f32.mrf.mxu0
  %v217 = vadd.f32 %v55, %v216
  %v218 = vpop.f32.mrf.mxu0
  %219 = vmatprep.mubr.f32.mxu0 0.0
  %220 = vmatmul.mubr.f32.gmra.mxu0 %v86
  %v221 = vpop.f32.mrf.mxu0
  %v222 = vadd.f32 %v55, %v221
  %v223 = vpop.f32.mrf.mxu0
  %224 = vmatprep.mubr.f32.mxu0 0.0
  %225 = vmatmul.mubr.f32.gmra.mxu0 %v89
  %v226 = vpop.f32.mrf.mxu0
  %v227 = vadd.f32 %v55, %v226
  %v228 = vpop.f32.mrf.mxu0
  %229 = vmatprep.mubr.f32.mxu0 0.0
  %230 = vmatmul.mubr.f32.gmra.mxu0 %v92
  %v231 = vpop.f32.mrf.mxu0
  %v232 = vadd.f32 %v55, %v231
  %v233 = vpop.f32.mrf.mxu0
  %234 = vmatprep.mubr.f32.mxu0 0.0
  %235 = vmatmul.mubr.f32.gmra.mxu0 %v95
  %v236 = vpop.f32.mrf.mxu0
  %v237 = vadd.f32 %v55, %v236
  %v238 = vpop.f32.mrf.mxu0
  %239 = vmatprep.mubr.f32.mxu0 0.0
  %240 = vmatmul.mubr.f32.gmra.mxu0 %v98
  %v241 = vpop.f32.mrf.mxu0
  %v242 = vadd.f32 %v55, %v241
  %v243 = vpop.f32.mrf.mxu0
  %244 = vmatprep.mubr.f32.mxu0 0.0
  %245 = vmatmul.mubr.f32.gmra.mxu0 %v101
  %v246 = vpop.f32.mrf.mxu0
  %v247 = vadd.f32 %v55, %v246
  %v248 = vpop.f32.mrf.mxu0
  %249 = vmatprep.mubr.f32.mxu0 0.0
  %250 = vmatmul.mubr.f32.gmra.mxu0 %v104
  %v251 = vpop.f32.mrf.mxu0
  %v252 = vadd.f32 %v55, %v251
  %v253 = vpop.f32.mrf.mxu0
  %254 = vdwg.mxu0
  %v255 = vld [vmem:[%s2] sm:$0xff]
  %v256 = vld [vmem:[%s2 + $0x8] sm:$0xff]
  %v257 = vld [vmem:[%s2 + $0x10] sm:$0xff]
  %v258 = vld [vmem:[%s2 + $0x18] sm:$0xff]
  %v259 = vld [vmem:[%s2 + $0x20] sm:$0xff]
  %v260 = vld [vmem:[%s2 + $0x28] sm:$0xff]
  %v261 = vld [vmem:[%s2 + $0x30] sm:$0xff]
  %v262 = vld [vmem:[%s2 + $0x38] sm:$0xff]
  %v263 = vsel %vm31, %v177, %v247
  %v264 = vsel %vm31, %v182, %v252
  %vm265 = vcmask 523264
  %v267 = vsel %vm265, 0.0, 0
  %269 = vmatprep.subr.mxu0 0.0
  %270 = vmatpush1.msra.mxu0 0.0
  %271 = vmatprep.subr.mxu0 0.0
  %272 = vmatpush1.msra.mxu0 0.0
  %273 = vmatprep.subr.mxu0 0.0
  %274 = vmatpush1.msra.mxu0 0.0
  %275 = vmatprep.subr.mxu0 0.0
  %276 = vmatpush1.msra.mxu0 0.0
  %277 = vmatprep.subr.mxu0 0.0
  %278 = vmatpush1.msra.mxu0 0.0
  %279 = vmatprep.subr.mxu0 0.0
  %280 = vmatpush1.msra.mxu0 0.0
  %281 = vmatprep.subr.mxu0 0.0
  %282 = vmatpush1.msra.mxu0 0.0
  %283 = vmatprep.subr.mxu0 0.0
  %284 = vmatpush1.msra.mxu0 0.0
  %285 = vmatprep.subr.mxu0 0.0
  %286 = vmatpush1.msra.mxu0 %v262
  %287 = vmatprep.subr.mxu0 0.0
  %288 = vmatpush1.msra.mxu0 %v261
  %289 = vmatprep.subr.mxu0 0.0
  %290 = vmatpush1.msra.mxu0 %v260
  %291 = vmatprep.subr.mxu0 0.0
  %292 = vmatpush1.msra.mxu0 %v259
  %293 = vmatprep.subr.mxu0 0.0
  %294 = vmatpush1.msra.mxu0 %v258
  %295 = vmatprep.subr.mxu0 0.0
  %296 = vmatpush1.msra.mxu0 %v257
  %297 = vmatprep.subr.mxu0 0.0
  %298 = vmatpush1.msra.mxu0 %v256
  %299 = vmatprep.subr.mxu0 0.0
  %300 = vmatpush1.msra.mxu0 %v255
  %301 = vmatprep.subr.mxu0 0.0
  %302 = vmatpush2.msra.mxu0 0.0
  %303 = vmatprep.subr.mxu0 0.0
  %304 = vmatpush2.msra.mxu0 0.0
  %305 = vmatprep.subr.mxu0 0.0
  %306 = vmatpush2.msra.mxu0 0.0
  %307 = vmatprep.subr.mxu0 0.0
  %308 = vmatpush2.msra.mxu0 0.0
  %309 = vmatprep.subr.mxu0 0.0
  %310 = vmatpush2.msra.mxu0 0.0
  %311 = vmatprep.subr.mxu0 0.0
  %312 = vmatpush2.msra.mxu0 0.0
  %313 = vmatprep.subr.mxu0 0.0
  %314 = vmatpush2.msra.mxu0 0.0
  %315 = vmatprep.subr.mxu0 0.0
  %316 = vmatpush2.msra.mxu0 0.0
  %317 = vmatprep.subr.mxu0 0.0
  %318 = vmatpush2.msra.mxu0 0.0
  %319 = vmatprep.subr.mxu0 0.0
  %320 = vmatpush2.msra.mxu0 0.0
  %321 = vmatprep.subr.mxu0 0.0
  %322 = vmatpush2.msra.mxu0 0.0
  %323 = vmatprep.subr.mxu0 0.0
  %324 = vmatpush2.msra.mxu0 0.0
  %325 = vmatprep.subr.mxu0 0.0
  %326 = vmatpush2.msra.mxu0 0.0
  %327 = vmatprep.subr.mxu0 0.0
  %328 = vmatpush2.msra.mxu0 0.0
  %329 = vmatprep.subr.mxu0 0.0
  %330 = vmatpush2.msra.mxu0 0.0
  %331 = vmatprep.subr.mxu0 0.0
  %332 = vmatpush2.msra.mxu0 0.0
  %333 = vmatprep.mubr.f32.mxu0 0.0
  %334 = vmatmul.mubr.f32.gmra.mxu0 %v267
  %v335 = vpop.f32.mrf.mxu0
  %v336 = vadd.f32 0.0, %v335
  %v337 = vpop.f32.mrf.mxu0
  %338 = vmatprep.mubr.f32.mxu0 0.0
  %339 = vmatmul.mubr.f32.gmra.mxu0 %v267
  %v340 = vpop.f32.mrf.mxu0
  %v341 = vadd.f32 0.0, %v340
  %v342 = vpop.f32.mrf.mxu0
  %343 = vdwg.mxu0
  %v344 = vadd.f32 %v263, %v336
  %v345 = vadd.f32 %v264, %v341
  %v346 = vtanh.pop %v344
  %v347 = vtanh.pop %v345
  %v348 = vsel %vm31, %v187, %v237
  %v349 = vsel %vm31, %v192, %v242
  %v351 = vsel %vm265, %v346, 0
  %v354 = vsel %vm265, %v347, 0
  %356 = vmatprep.subr.mxu0 0.0
  %357 = vmatpush1.msra.mxu0 0.0
  %358 = vmatprep.subr.mxu0 0.0
  %359 = vmatpush1.msra.mxu0 0.0
  %360 = vmatprep.subr.mxu0 0.0
  %361 = vmatpush1.msra.mxu0 0.0
  %362 = vmatprep.subr.mxu0 0.0
  %363 = vmatpush1.msra.mxu0 0.0
  %364 = vmatprep.subr.mxu0 0.0
  %365 = vmatpush1.msra.mxu0 0.0
  %366 = vmatprep.subr.mxu0 0.0
  %367 = vmatpush1.msra.mxu0 0.0
  %368 = vmatprep.subr.mxu0 0.0
  %369 = vmatpush1.msra.mxu0 0.0
  %370 = vmatprep.subr.mxu0 0.0
  %371 = vmatpush1.msra.mxu0 0.0
  %372 = vmatprep.subr.mxu0 0.0
  %373 = vmatpush1.msra.mxu0 %v262
  %374 = vmatprep.subr.mxu0 0.0
  %375 = vmatpush1.msra.mxu0 %v261
  %376 = vmatprep.subr.mxu0 0.0
  %377 = vmatpush1.msra.mxu0 %v260
  %378 = vmatprep.subr.mxu0 0.0
  %379 = vmatpush1.msra.mxu0 %v259
  %380 = vmatprep.subr.mxu0 0.0
  %381 = vmatpush1.msra.mxu0 %v258
  %382 = vmatprep.subr.mxu0 0.0
  %383 = vmatpush1.msra.mxu0 %v257
  %384 = vmatprep.subr.mxu0 0.0
  %385 = vmatpush1.msra.mxu0 %v256
  %386 = vmatprep.subr.mxu0 0.0
  %387 = vmatpush1.msra.mxu0 %v255
  %388 = vmatprep.subr.mxu0 0.0
  %389 = vmatpush2.msra.mxu0 0.0
  %390 = vmatprep.subr.mxu0 0.0
  %391 = vmatpush2.msra.mxu0 0.0
  %392 = vmatprep.subr.mxu0 0.0
  %393 = vmatpush2.msra.mxu0 0.0
  %394 = vmatprep.subr.mxu0 0.0
  %395 = vmatpush2.msra.mxu0 0.0
  %396 = vmatprep.subr.mxu0 0.0
  %397 = vmatpush2.msra.mxu0 0.0
  %398 = vmatprep.subr.mxu0 0.0
  %399 = vmatpush2.msra.mxu0 0.0
  %400 = vmatprep.subr.mxu0 0.0
  %401 = vmatpush2.msra.mxu0 0.0
  %402 = vmatprep.subr.mxu0 0.0
  %403 = vmatpush2.msra.mxu0 0.0
  %404 = vmatprep.subr.mxu0 0.0
  %405 = vmatpush2.msra.mxu0 0.0
  %406 = vmatprep.subr.mxu0 0.0
  %407 = vmatpush2.msra.mxu0 0.0
  %408 = vmatprep.subr.mxu0 0.0
  %409 = vmatpush2.msra.mxu0 0.0
  %410 = vmatprep.subr.mxu0 0.0
  %411 = vmatpush2.msra.mxu0 0.0
  %412 = vmatprep.subr.mxu0 0.0
  %413 = vmatpush2.msra.mxu0 0.0
  %414 = vmatprep.subr.mxu0 0.0
  %415 = vmatpush2.msra.mxu0 0.0
  %416 = vmatprep.subr.mxu0 0.0
  %417 = vmatpush2.msra.mxu0 0.0
  %418 = vmatprep.subr.mxu0 0.0
  %419 = vmatpush2.msra.mxu0 0.0
  %420 = vmatprep.mubr.f32.mxu0 0.0
  %421 = vmatmul.mubr.f32.gmra.mxu0 %v351
  %v422 = vpop.f32.mrf.mxu0
  %v423 = vadd.f32 0.0, %v422
  %v424 = vpop.f32.mrf.mxu0
  %425 = vmatprep.mubr.f32.mxu0 0.0
  %426 = vmatmul.mubr.f32.gmra.mxu0 %v354
  %v427 = vpop.f32.mrf.mxu0
  %v428 = vadd.f32 0.0, %v427
  %v429 = vpop.f32.mrf.mxu0
  %430 = vdwg.mxu0
  %v431 = vadd.f32 %v348, %v423
  %v432 = vadd.f32 %v349, %v428
  %v433 = vtanh.pop %v431
  %v434 = vtanh.pop %v432
  %v435 = vsel %vm31, %v197, %v227
  %v436 = vsel %vm31, %v202, %v232
  %v438 = vsel %vm265, %v433, 0
  %v441 = vsel %vm265, %v434, 0
  %443 = vmatprep.subr.mxu0 0.0
  %444 = vmatpush1.msra.mxu0 0.0
  %445 = vmatprep.subr.mxu0 0.0
  %446 = vmatpush1.msra.mxu0 0.0
  %447 = vmatprep.subr.mxu0 0.0
  %448 = vmatpush1.msra.mxu0 0.0
  %449 = vmatprep.subr.mxu0 0.0
  %450 = vmatpush1.msra.mxu0 0.0
  %451 = vmatprep.subr.mxu0 0.0
  %452 = vmatpush1.msra.mxu0 0.0
  %453 = vmatprep.subr.mxu0 0.0
  %454 = vmatpush1.msra.mxu0 0.0
  %455 = vmatprep.subr.mxu0 0.0
  %456 = vmatpush1.msra.mxu0 0.0
  %457 = vmatprep.subr.mxu0 0.0
  %458 = vmatpush1.msra.mxu0 0.0
  %459 = vmatprep.subr.mxu0 0.0
  %460 = vmatpush1.msra.mxu0 %v262
  %461 = vmatprep.subr.mxu0 0.0
  %462 = vmatpush1.msra.mxu0 %v261
  %463 = vmatprep.subr.mxu0 0.0
  %464 = vmatpush1.msra.mxu0 %v260
  %465 = vmatprep.subr.mxu0 0.0
  %466 = vmatpush1.msra.mxu0 %v259
  %467 = vmatprep.subr.mxu0 0.0
  %468 = vmatpush1.msra.mxu0 %v258
  %469 = vmatprep.subr.mxu0 0.0
  %470 = vmatpush1.msra.mxu0 %v257
  %471 = vmatprep.subr.mxu0 0.0
  %472 = vmatpush1.msra.mxu0 %v256
  %473 = vmatprep.subr.mxu0 0.0
  %474 = vmatpush1.msra.mxu0 %v255
  %475 = vmatprep.subr.mxu0 0.0
  %476 = vmatpush2.msra.mxu0 0.0
  %477 = vmatprep.subr.mxu0 0.0
  %478 = vmatpush2.msra.mxu0 0.0
  %479 = vmatprep.subr.mxu0 0.0
  %480 = vmatpush2.msra.mxu0 0.0
  %481 = vmatprep.subr.mxu0 0.0
  %482 = vmatpush2.msra.mxu0 0.0
  %483 = vmatprep.subr.mxu0 0.0
  %484 = vmatpush2.msra.mxu0 0.0
  %485 = vmatprep.subr.mxu0 0.0
  %486 = vmatpush2.msra.mxu0 0.0
  %487 = vmatprep.subr.mxu0 0.0
  %488 = vmatpush2.msra.mxu0 0.0
  %489 = vmatprep.subr.mxu0 0.0
  %490 = vmatpush2.msra.mxu0 0.0
  %491 = vmatprep.subr.mxu0 0.0
  %492 = vmatpush2.msra.mxu0 0.0
  %493 = vmatprep.subr.mxu0 0.0
  %494 = vmatpush2.msra.mxu0 0.0
  %495 = vmatprep.subr.mxu0 0.0
  %496 = vmatpush2.msra.mxu0 0.0
  %497 = vmatprep.subr.mxu0 0.0
  %498 = vmatpush2.msra.mxu0 0.0
  %499 = vmatprep.subr.mxu0 0.0
  %500 = vmatpush2.msra.mxu0 0.0
  %501 = vmatprep.subr.mxu0 0.0
  %502 = vmatpush2.msra.mxu0 0.0
  %503 = vmatprep.subr.mxu0 0.0
  %504 = vmatpush2.msra.mxu0 0.0
  %505 = vmatprep.subr.mxu0 0.0
  %506 = vmatpush2.msra.mxu0 0.0
  %507 = vmatprep.mubr.f32.mxu0 0.0
  %508 = vmatmul.mubr.f32.gmra.mxu0 %v438
  %v509 = vpop.f32.mrf.mxu0
  %v510 = vadd.f32 0.0, %v509
  %v511 = vpop.f32.mrf.mxu0
  %512 = vmatprep.mubr.f32.mxu0 0.0
  %513 = vmatmul.mubr.f32.gmra.mxu0 %v441
  %v514 = vpop.f32.mrf.mxu0
  %v515 = vadd.f32 0.0, %v514
  %v516 = vpop.f32.mrf.mxu0
  %517 = vdwg.mxu0
  %v518 = vadd.f32 %v435, %v510
  %v519 = vadd.f32 %v436, %v515
  %v520 = vtanh.pop %v518
  %v521 = vtanh.pop %v519
  %v522 = vsel %vm31, %v207, %v217
  %v523 = vsel %vm31, %v212, %v222
  %v525 = vsel %vm265, %v520, 0
  %v528 = vsel %vm265, %v521, 0
  %530 = vmatprep.subr.mxu0 0.0
  %531 = vmatpush1.msra.mxu0 0.0
  %532 = vmatprep.subr.mxu0 0.0
  %533 = vmatpush1.msra.mxu0 0.0
  %534 = vmatprep.subr.mxu0 0.0
  %535 = vmatpush1.msra.mxu0 0.0
  %536 = vmatprep.subr.mxu0 0.0
  %537 = vmatpush1.msra.mxu0 0.0
  %538 = vmatprep.subr.mxu0 0.0
  %539 = vmatpush1.msra.mxu0 0.0
  %540 = vmatprep.subr.mxu0 0.0
  %541 = vmatpush1.msra.mxu0 0.0
  %542 = vmatprep.subr.mxu0 0.0
  %543 = vmatpush1.msra.mxu0 0.0
  %544 = vmatprep.subr.mxu0 0.0
  %545 = vmatpush1.msra.mxu0 0.0
  %546 = vmatprep.subr.mxu0 0.0
  %547 = vmatpush1.msra.mxu0 %v262
  %548 = vmatprep.subr.mxu0 0.0
  %549 = vmatpush1.msra.mxu0 %v261
  %550 = vmatprep.subr.mxu0 0.0
  %551 = vmatpush1.msra.mxu0 %v260
  %552 = vmatprep.subr.mxu0 0.0
  %553 = vmatpush1.msra.mxu0 %v259
  %554 = vmatprep.subr.mxu0 0.0
  %555 = vmatpush1.msra.mxu0 %v258
  %556 = vmatprep.subr.mxu0 0.0
  %557 = vmatpush1.msra.mxu0 %v257
  %558 = vmatprep.subr.mxu0 0.0
  %559 = vmatpush1.msra.mxu0 %v256
  %560 = vmatprep.subr.mxu0 0.0
  %561 = vmatpush1.msra.mxu0 %v255
  %562 = vmatprep.subr.mxu0 0.0
  %563 = vmatpush2.msra.mxu0 0.0
  %564 = vmatprep.subr.mxu0 0.0
  %565 = vmatpush2.msra.mxu0 0.0
  %566 = vmatprep.subr.mxu0 0.0
  %567 = vmatpush2.msra.mxu0 0.0
  %568 = vmatprep.subr.mxu0 0.0
  %569 = vmatpush2.msra.mxu0 0.0
  %570 = vmatprep.subr.mxu0 0.0
  %571 = vmatpush2.msra.mxu0 0.0
  %572 = vmatprep.subr.mxu0 0.0
  %573 = vmatpush2.msra.mxu0 0.0
  %574 = vmatprep.subr.mxu0 0.0
  %575 = vmatpush2.msra.mxu0 0.0
  %576 = vmatprep.subr.mxu0 0.0
  %577 = vmatpush2.msra.mxu0 0.0
  %578 = vmatprep.subr.mxu0 0.0
  %579 = vmatpush2.msra.mxu0 0.0
  %580 = vmatprep.subr.mxu0 0.0
  %581 = vmatpush2.msra.mxu0 0.0
  %582 = vmatprep.subr.mxu0 0.0
  %583 = vmatpush2.msra.mxu0 0.0
  %584 = vmatprep.subr.mxu0 0.0
  %585 = vmatpush2.msra.mxu0 0.0
  %586 = vmatprep.subr.mxu0 0.0
  %587 = vmatpush2.msra.mxu0 0.0
  %588 = vmatprep.subr.mxu0 0.0
  %589 = vmatpush2.msra.mxu0 0.0
  %590 = vmatprep.subr.mxu0 0.0
  %591 = vmatpush2.msra.mxu0 0.0
  %592 = vmatprep.subr.mxu0 0.0
  %593 = vmatpush2.msra.mxu0 0.0
  %594 = vmatprep.mubr.f32.mxu0 0.0
  %595 = vmatmul.mubr.f32.gmra.mxu0 %v525
  %v596 = vpop.f32.mrf.mxu0
  %v597 = vadd.f32 0.0, %v596
  %v598 = vpop.f32.mrf.mxu0
  %599 = vmatprep.mubr.f32.mxu0 0.0
  %600 = vmatmul.mubr.f32.gmra.mxu0 %v528
  %v601 = vpop.f32.mrf.mxu0
  %v602 = vadd.f32 0.0, %v601
  %v603 = vpop.f32.mrf.mxu0
  %604 = vdwg.mxu0
  %v605 = vadd.f32 %v522, %v597
  %v606 = vadd.f32 %v523, %v602
  %v607 = vtanh.pop %v605
  %v608 = vtanh.pop %v606
  %v609 = vsel %vm31, %v217, %v207
  %v610 = vsel %vm31, %v222, %v212
  %v612 = vsel %vm265, %v607, 0
  %v615 = vsel %vm265, %v608, 0
  %617 = vmatprep.subr.mxu0 0.0
  %618 = vmatpush1.msra.mxu0 0.0
  %619 = vmatprep.subr.mxu0 0.0
  %620 = vmatpush1.msra.mxu0 0.0
  %621 = vmatprep.subr.mxu0 0.0
  %622 = vmatpush1.msra.mxu0 0.0
  %623 = vmatprep.subr.mxu0 0.0
  %624 = vmatpush1.msra.mxu0 0.0
  %625 = vmatprep.subr.mxu0 0.0
  %626 = vmatpush1.msra.mxu0 0.0
  %627 = vmatprep.subr.mxu0 0.0
  %628 = vmatpush1.msra.mxu0 0.0
  %629 = vmatprep.subr.mxu0 0.0
  %630 = vmatpush1.msra.mxu0 0.0
  %631 = vmatprep.subr.mxu0 0.0
  %632 = vmatpush1.msra.mxu0 0.0
  %633 = vmatprep.subr.mxu0 0.0
  %634 = vmatpush1.msra.mxu0 %v262
  %635 = vmatprep.subr.mxu0 0.0
  %636 = vmatpush1.msra.mxu0 %v261
  %637 = vmatprep.subr.mxu0 0.0
  %638 = vmatpush1.msra.mxu0 %v260
  %639 = vmatprep.subr.mxu0 0.0
  %640 = vmatpush1.msra.mxu0 %v259
  %641 = vmatprep.subr.mxu0 0.0
  %642 = vmatpush1.msra.mxu0 %v258
  %643 = vmatprep.subr.mxu0 0.0
  %644 = vmatpush1.msra.mxu0 %v257
  %645 = vmatprep.subr.mxu0 0.0
  %646 = vmatpush1.msra.mxu0 %v256
  %647 = vmatprep.subr.mxu0 0.0
  %648 = vmatpush1.msra.mxu0 %v255
  %649 = vmatprep.subr.mxu0 0.0
  %650 = vmatpush2.msra.mxu0 0.0
  %651 = vmatprep.subr.mxu0 0.0
  %652 = vmatpush2.msra.mxu0 0.0
  %653 = vmatprep.subr.mxu0 0.0
  %654 = vmatpush2.msra.mxu0 0.0
  %655 = vmatprep.subr.mxu0 0.0
  %656 = vmatpush2.msra.mxu0 0.0
  %657 = vmatprep.subr.mxu0 0.0
  %658 = vmatpush2.msra.mxu0 0.0
  %659 = vmatprep.subr.mxu0 0.0
  %660 = vmatpush2.msra.mxu0 0.0
  %661 = vmatprep.subr.mxu0 0.0
  %662 = vmatpush2.msra.mxu0 0.0
  %663 = vmatprep.subr.mxu0 0.0
  %664 = vmatpush2.msra.mxu0 0.0
  %665 = vmatprep.subr.mxu0 0.0
  %666 = vmatpush2.msra.mxu0 0.0
  %667 = vmatprep.subr.mxu0 0.0
  %668 = vmatpush2.msra.mxu0 0.0
  %669 = vmatprep.subr.mxu0 0.0
  %670 = vmatpush2.msra.mxu0 0.0
  %671 = vmatprep.subr.mxu0 0.0
  %672 = vmatpush2.msra.mxu0 0.0
  %673 = vmatprep.subr.mxu0 0.0
  %674 = vmatpush2.msra.mxu0 0.0
  %675 = vmatprep.subr.mxu0 0.0
  %676 = vmatpush2.msra.mxu0 0.0
  %677 = vmatprep.subr.mxu0 0.0
  %678 = vmatpush2.msra.mxu0 0.0
  %679 = vmatprep.subr.mxu0 0.0
  %680 = vmatpush2.msra.mxu0 0.0
  %681 = vmatprep.mubr.f32.mxu0 0.0
  %682 = vmatmul.mubr.f32.gmra.mxu0 %v612
  %v683 = vpop.f32.mrf.mxu0
  %v684 = vadd.f32 0.0, %v683
  %v685 = vpop.f32.mrf.mxu0
  %686 = vmatprep.mubr.f32.mxu0 0.0
  %687 = vmatmul.mubr.f32.gmra.mxu0 %v615
  %v688 = vpop.f32.mrf.mxu0
  %v689 = vadd.f32 0.0, %v688
  %v690 = vpop.f32.mrf.mxu0
  %691 = vdwg.mxu0
  %v692 = vadd.f32 %v609, %v684
  %v693 = vadd.f32 %v610, %v689
  %v694 = vtanh.pop %v692
  %v695 = vtanh.pop %v693
  %v696 = vsel %vm31, %v227, %v197
  %v697 = vsel %vm31, %v232, %v202
  %v699 = vsel %vm265, %v694, 0
  %v702 = vsel %vm265, %v695, 0
  %704 = vmatprep.subr.mxu0 0.0
  %705 = vmatpush1.msra.mxu0 0.0
  %706 = vmatprep.subr.mxu0 0.0
  %707 = vmatpush1.msra.mxu0 0.0
  %708 = vmatprep.subr.mxu0 0.0
  %709 = vmatpush1.msra.mxu0 0.0
  %710 = vmatprep.subr.mxu0 0.0
  %711 = vmatpush1.msra.mxu0 0.0
  %712 = vmatprep.subr.mxu0 0.0
  %713 = vmatpush1.msra.mxu0 0.0
  %714 = vmatprep.subr.mxu0 0.0
  %715 = vmatpush1.msra.mxu0 0.0
  %716 = vmatprep.subr.mxu0 0.0
  %717 = vmatpush1.msra.mxu0 0.0
  %718 = vmatprep.subr.mxu0 0.0
  %719 = vmatpush1.msra.mxu0 0.0
  %720 = vmatprep.subr.mxu0 0.0
  %721 = vmatpush1.msra.mxu0 %v262
  %722 = vmatprep.subr.mxu0 0.0
  %723 = vmatpush1.msra.mxu0 %v261
  %724 = vmatprep.subr.mxu0 0.0
  %725 = vmatpush1.msra.mxu0 %v260
  %726 = vmatprep.subr.mxu0 0.0
  %727 = vmatpush1.msra.mxu0 %v259
  %728 = vmatprep.subr.mxu0 0.0
  %729 = vmatpush1.msra.mxu0 %v258
  %730 = vmatprep.subr.mxu0 0.0
  %731 = vmatpush1.msra.mxu0 %v257
  %732 = vmatprep.subr.mxu0 0.0
  %733 = vmatpush1.msra.mxu0 %v256
  %734 = vmatprep.subr.mxu0 0.0
  %735 = vmatpush1.msra.mxu0 %v255
  %736 = vmatprep.subr.mxu0 0.0
  %737 = vmatpush2.msra.mxu0 0.0
  %738 = vmatprep.subr.mxu0 0.0
  %739 = vmatpush2.msra.mxu0 0.0
  %740 = vmatprep.subr.mxu0 0.0
  %741 = vmatpush2.msra.mxu0 0.0
  %742 = vmatprep.subr.mxu0 0.0
  %743 = vmatpush2.msra.mxu0 0.0
  %744 = vmatprep.subr.mxu0 0.0
  %745 = vmatpush2.msra.mxu0 0.0
  %746 = vmatprep.subr.mxu0 0.0
  %747 = vmatpush2.msra.mxu0 0.0
  %748 = vmatprep.subr.mxu0 0.0
  %749 = vmatpush2.msra.mxu0 0.0
  %750 = vmatprep.subr.mxu0 0.0
  %751 = vmatpush2.msra.mxu0 0.0
  %752 = vmatprep.subr.mxu0 0.0
  %753 = vmatpush2.msra.mxu0 0.0
  %754 = vmatprep.subr.mxu0 0.0
  %755 = vmatpush2.msra.mxu0 0.0
  %756 = vmatprep.subr.mxu0 0.0
  %757 = vmatpush2.msra.mxu0 0.0
  %758 = vmatprep.subr.mxu0 0.0
  %759 = vmatpush2.msra.mxu0 0.0
  %760 = vmatprep.subr.mxu0 0.0
  %761 = vmatpush2.msra.mxu0 0.0
  %762 = vmatprep.subr.mxu0 0.0
  %763 = vmatpush2.msra.mxu0 0.0
  %764 = vmatprep.subr.mxu0 0.0
  %765 = vmatpush2.msra.mxu0 0.0
  %766 = vmatprep.subr.mxu0 0.0
  %767 = vmatpush2.msra.mxu0 0.0
  %768 = vmatprep.mubr.f32.mxu0 0.0
  %769 = vmatmul.mubr.f32.gmra.mxu0 %v699
  %v770 = vpop.f32.mrf.mxu0
  %v771 = vadd.f32 0.0, %v770
  %v772 = vpop.f32.mrf.mxu0
  %773 = vmatprep.mubr.f32.mxu0 0.0
  %774 = vmatmul.mubr.f32.gmra.mxu0 %v702
  %v775 = vpop.f32.mrf.mxu0
  %v776 = vadd.f32 0.0, %v775
  %v777 = vpop.f32.mrf.mxu0
  %778 = vdwg.mxu0
  %v779 = vadd.f32 %v696, %v771
  %v780 = vadd.f32 %v697, %v776
  %v781 = vtanh.pop %v779
  %v782 = vtanh.pop %v780
  %v783 = vsel %vm31, %v237, %v187
  %v784 = vsel %vm31, %v242, %v192
  %v786 = vsel %vm265, %v781, 0
  %v789 = vsel %vm265, %v782, 0
  %791 = vmatprep.subr.mxu0 0.0
  %792 = vmatpush1.msra.mxu0 0.0
  %793 = vmatprep.subr.mxu0 0.0
  %794 = vmatpush1.msra.mxu0 0.0
  %795 = vmatprep.subr.mxu0 0.0
  %796 = vmatpush1.msra.mxu0 0.0
  %797 = vmatprep.subr.mxu0 0.0
  %798 = vmatpush1.msra.mxu0 0.0
  %799 = vmatprep.subr.mxu0 0.0
  %800 = vmatpush1.msra.mxu0 0.0
  %801 = vmatprep.subr.mxu0 0.0
  %802 = vmatpush1.msra.mxu0 0.0
  %803 = vmatprep.subr.mxu0 0.0
  %804 = vmatpush1.msra.mxu0 0.0
  %805 = vmatprep.subr.mxu0 0.0
  %806 = vmatpush1.msra.mxu0 0.0
  %807 = vmatprep.subr.mxu0 0.0
  %808 = vmatpush1.msra.mxu0 %v262
  %809 = vmatprep.subr.mxu0 0.0
  %810 = vmatpush1.msra.mxu0 %v261
  %811 = vmatprep.subr.mxu0 0.0
  %812 = vmatpush1.msra.mxu0 %v260
  %813 = vmatprep.subr.mxu0 0.0
  %814 = vmatpush1.msra.mxu0 %v259
  %815 = vmatprep.subr.mxu0 0.0
  %816 = vmatpush1.msra.mxu0 %v258
  %817 = vmatprep.subr.mxu0 0.0
  %818 = vmatpush1.msra.mxu0 %v257
  %819 = vmatprep.subr.mxu0 0.0
  %820 = vmatpush1.msra.mxu0 %v256
  %821 = vmatprep.subr.mxu0 0.0
  %822 = vmatpush1.msra.mxu0 %v255
  %823 = vmatprep.subr.mxu0 0.0
  %824 = vmatpush2.msra.mxu0 0.0
  %825 = vmatprep.subr.mxu0 0.0
  %826 = vmatpush2.msra.mxu0 0.0
  %827 = vmatprep.subr.mxu0 0.0
  %828 = vmatpush2.msra.mxu0 0.0
  %829 = vmatprep.subr.mxu0 0.0
  %830 = vmatpush2.msra.mxu0 0.0
  %831 = vmatprep.subr.mxu0 0.0
  %832 = vmatpush2.msra.mxu0 0.0
  %833 = vmatprep.subr.mxu0 0.0
  %834 = vmatpush2.msra.mxu0 0.0
  %835 = vmatprep.subr.mxu0 0.0
  %836 = vmatpush2.msra.mxu0 0.0
  %837 = vmatprep.subr.mxu0 0.0
  %838 = vmatpush2.msra.mxu0 0.0
  %839 = vmatprep.subr.mxu0 0.0
  %840 = vmatpush2.msra.mxu0 0.0
  %841 = vmatprep.subr.mxu0 0.0
  %842 = vmatpush2.msra.mxu0 0.0
  %843 = vmatprep.subr.mxu0 0.0
  %844 = vmatpush2.msra.mxu0 0.0
  %845 = vmatprep.subr.mxu0 0.0
  %846 = vmatpush2.msra.mxu0 0.0
  %847 = vmatprep.subr.mxu0 0.0
  %848 = vmatpush2.msra.mxu0 0.0
  %849 = vmatprep.subr.mxu0 0.0
  %850 = vmatpush2.msra.mxu0 0.0
  %851 = vmatprep.subr.mxu0 0.0
  %852 = vmatpush2.msra.mxu0 0.0
  %853 = vmatprep.subr.mxu0 0.0
  %854 = vmatpush2.msra.mxu0 0.0
  %855 = vmatprep.mubr.f32.mxu0 0.0
  %856 = vmatmul.mubr.f32.gmra.mxu0 %v786
  %v857 = vpop.f32.mrf.mxu0
  %v858 = vadd.f32 0.0, %v857
  %v859 = vpop.f32.mrf.mxu0
  %860 = vmatprep.mubr.f32.mxu0 0.0
  %861 = vmatmul.mubr.f32.gmra.mxu0 %v789
  %v862 = vpop.f32.mrf.mxu0
  %v863 = vadd.f32 0.0, %v862
  %v864 = vpop.f32.mrf.mxu0
  %865 = vdwg.mxu0
  %v866 = vadd.f32 %v783, %v858
  %v867 = vadd.f32 %v784, %v863
  %v868 = vtanh.pop %v866
  %v869 = vtanh.pop %v867
  %v870 = vsel %vm31, %v247, %v177
  %v871 = vsel %vm31, %v252, %v182
  %v873 = vsel %vm265, %v868, 0
  %v876 = vsel %vm265, %v869, 0
  %878 = vmatprep.subr.mxu0 0.0
  %879 = vmatpush1.msra.mxu0 0.0
  %880 = vmatprep.subr.mxu0 0.0
  %881 = vmatpush1.msra.mxu0 0.0
  %882 = vmatprep.subr.mxu0 0.0
  %883 = vmatpush1.msra.mxu0 0.0
  %884 = vmatprep.subr.mxu0 0.0
  %885 = vmatpush1.msra.mxu0 0.0
  %886 = vmatprep.subr.mxu0 0.0
  %887 = vmatpush1.msra.mxu0 0.0
  %888 = vmatprep.subr.mxu0 0.0
  %889 = vmatpush1.msra.mxu0 0.0
  %890 = vmatprep.subr.mxu0 0.0
  %891 = vmatpush1.msra.mxu0 0.0
  %892 = vmatprep.subr.mxu0 0.0
  %893 = vmatpush1.msra.mxu0 0.0
  %894 = vmatprep.subr.mxu0 0.0
  %895 = vmatpush1.msra.mxu0 %v262
  %896 = vmatprep.subr.mxu0 0.0
  %897 = vmatpush1.msra.mxu0 %v261
  %898 = vmatprep.subr.mxu0 0.0
  %899 = vmatpush1.msra.mxu0 %v260
  %900 = vmatprep.subr.mxu0 0.0
  %901 = vmatpush1.msra.mxu0 %v259
  %902 = vmatprep.subr.mxu0 0.0
  %903 = vmatpush1.msra.mxu0 %v258
  %904 = vmatprep.subr.mxu0 0.0
  %905 = vmatpush1.msra.mxu0 %v257
  %906 = vmatprep.subr.mxu0 0.0
  %907 = vmatpush1.msra.mxu0 %v256
  %908 = vmatprep.subr.mxu0 0.0
  %909 = vmatpush1.msra.mxu0 %v255
  %910 = vmatprep.subr.mxu0 0.0
  %911 = vmatpush2.msra.mxu0 0.0
  %912 = vmatprep.subr.mxu0 0.0
  %913 = vmatpush2.msra.mxu0 0.0
  %914 = vmatprep.subr.mxu0 0.0
  %915 = vmatpush2.msra.mxu0 0.0
  %916 = vmatprep.subr.mxu0 0.0
  %917 = vmatpush2.msra.mxu0 0.0
  %918 = vmatprep.subr.mxu0 0.0
  %919 = vmatpush2.msra.mxu0 0.0
  %920 = vmatprep.subr.mxu0 0.0
  %921 = vmatpush2.msra.mxu0 0.0
  %922 = vmatprep.subr.mxu0 0.0
  %923 = vmatpush2.msra.mxu0 0.0
  %924 = vmatprep.subr.mxu0 0.0
  %925 = vmatpush2.msra.mxu0 0.0
  %926 = vmatprep.subr.mxu0 0.0
  %927 = vmatpush2.msra.mxu0 0.0
  %928 = vmatprep.subr.mxu0 0.0
  %929 = vmatpush2.msra.mxu0 0.0
  %930 = vmatprep.subr.mxu0 0.0
  %931 = vmatpush2.msra.mxu0 0.0
  %932 = vmatprep.subr.mxu0 0.0
  %933 = vmatpush2.msra.mxu0 0.0
  %934 = vmatprep.subr.mxu0 0.0
  %935 = vmatpush2.msra.mxu0 0.0
  %936 = vmatprep.subr.mxu0 0.0
  %937 = vmatpush2.msra.mxu0 0.0
  %938 = vmatprep.subr.mxu0 0.0
  %939 = vmatpush2.msra.mxu0 0.0
  %940 = vmatprep.subr.mxu0 0.0
  %941 = vmatpush2.msra.mxu0 0.0
  %942 = vmatprep.mubr.f32.mxu0 0.0
  %943 = vmatmul.mubr.f32.gmra.mxu0 %v873
  %v944 = vpop.f32.mrf.mxu0
  %v945 = vadd.f32 0.0, %v944
  %v946 = vpop.f32.mrf.mxu0
  %947 = vmatprep.mubr.f32.mxu0 0.0
  %948 = vmatmul.mubr.f32.gmra.mxu0 %v876
  %v949 = vpop.f32.mrf.mxu0
  %v950 = vadd.f32 0.0, %v949
  %v951 = vpop.f32.mrf.mxu0
  %952 = vdwg.mxu0
  %v953 = vadd.f32 %v870, %v945
  %v954 = vadd.f32 %v871, %v950
  %v955 = vtanh.pop %v953
  %v956 = vtanh.pop %v954
  %v957 = vsel %vm31, %v346, %v955
  %v958 = vsel %vm31, %v347, %v956
  %v959 = vsel %vm31, %v433, %v868
  %v960 = vsel %vm31, %v434, %v869
  %v961 = vsel %vm31, %v520, %v781
  %v962 = vsel %vm31, %v521, %v782
  %v963 = vsel %vm31, %v607, %v694
  %v964 = vsel %vm31, %v608, %v695
  %v965 = vsel %vm31, %v694, %v607
  %v966 = vsel %vm31, %v695, %v608
  %v967 = vsel %vm31, %v781, %v520
  %v968 = vsel %vm31, %v782, %v521
  %v969 = vsel %vm31, %v868, %v433
  %v970 = vsel %vm31, %v869, %v434
  %v971 = vsel %vm31, %v955, %v346
  %v972 = vsel %vm31, %v956, %v347
  %v973 = vld [vmem:[%s4] sm:$0xff]
  %v974 = vld [vmem:[%s4 + $0x8] sm:$0xff]
  %v975 = vld [vmem:[%s4 + $0x10] sm:$0xff]
  %v976 = vld [vmem:[%s4 + $0x18] sm:$0xff]
  %v977 = vld [vmem:[%s4 + $0x20] sm:$0xff]
  %v978 = vld [vmem:[%s4 + $0x28] sm:$0xff]
  %v979 = vld [vmem:[%s4 + $0x30] sm:$0xff]
  %v980 = vld [vmem:[%s4 + $0x38] sm:$0xff]
  %v981 = vld [vmem:[%s4 + $0x40] sm:$0xff]
  %v982 = vld [vmem:[%s4 + $0x48] sm:$0xff]
  %v983 = vld [vmem:[%s4 + $0x50] sm:$0xff]
  %v984 = vld [vmem:[%s4 + $0x58] sm:$0xff]
  %v985 = vld [vmem:[%s4 + $0x60] sm:$0xff]
  %v986 = vld [vmem:[%s4 + $0x68] sm:$0xff]
  %v987 = vld [vmem:[%s4 + $0x70] sm:$0xff]
  %v988 = vld [vmem:[%s4 + $0x78] sm:$0xff]
  %v989 = vld [vmem:[%s5] sm:$0xff]
  %v990 = vld [vmem:[%s5 + $0x8] sm:$0xff]
  %v991 = vld [vmem:[%s5 + $0x10] sm:$0xff]
  %v992 = vld [vmem:[%s5 + $0x18] sm:$0xff]
  %v993 = vld [vmem:[%s5 + $0x20] sm:$0xff]
  %v994 = vld [vmem:[%s5 + $0x28] sm:$0xff]
  %v995 = vld [vmem:[%s5 + $0x30] sm:$0xff]
  %v996 = vld [vmem:[%s5 + $0x38] sm:$0xff]
  %v998 = vsel %vm265, %v957, 0
  %v1001 = vsel %vm265, %v958, 0
  %v1004 = vsel %vm265, %v959, 0
  %v1007 = vsel %vm265, %v960, 0
  %v1010 = vsel %vm265, %v961, 0
  %v1013 = vsel %vm265, %v962, 0
  %v1016 = vsel %vm265, %v963, 0
  %v1019 = vsel %vm265, %v964, 0
  %v1022 = vsel %vm265, %v965, 0
  %v1025 = vsel %vm265, %v966, 0
  %v1028 = vsel %vm265, %v967, 0
  %v1031 = vsel %vm265, %v968, 0
  %v1034 = vsel %vm265, %v969, 0
  %v1037 = vsel %vm265, %v970, 0
  %v1040 = vsel %vm265, %v971, 0
  %v1043 = vsel %vm265, %v972, 0
  %1045 = vmatprep.subr.mxu0 0.0
  %1046 = vmatpush1.msra.mxu0 0.0
  %1047 = vmatprep.subr.mxu0 0.0
  %1048 = vmatpush1.msra.mxu0 0.0
  %1049 = vmatprep.subr.mxu0 0.0
  %1050 = vmatpush1.msra.mxu0 0.0
  %1051 = vmatprep.subr.mxu0 0.0
  %1052 = vmatpush1.msra.mxu0 0.0
  %1053 = vmatprep.subr.mxu0 0.0
  %1054 = vmatpush1.msra.mxu0 0.0
  %1055 = vmatprep.subr.mxu0 0.0
  %1056 = vmatpush1.msra.mxu0 0.0
  %1057 = vmatprep.subr.mxu0 0.0
  %1058 = vmatpush1.msra.mxu0 0.0
  %1059 = vmatprep.subr.mxu0 0.0
  %1060 = vmatpush1.msra.mxu0 0.0
  %1061 = vmatprep.subr.mxu0 0.0
  %1062 = vmatpush1.msra.mxu0 %v996
  %1063 = vmatprep.subr.mxu0 0.0
  %1064 = vmatpush1.msra.mxu0 %v995
  %1065 = vmatprep.subr.mxu0 0.0
  %1066 = vmatpush1.msra.mxu0 %v994
  %1067 = vmatprep.subr.mxu0 0.0
  %1068 = vmatpush1.msra.mxu0 %v993
  %1069 = vmatprep.subr.mxu0 0.0
  %1070 = vmatpush1.msra.mxu0 %v992
  %1071 = vmatprep.subr.mxu0 0.0
  %1072 = vmatpush1.msra.mxu0 %v991
  %1073 = vmatprep.subr.mxu0 0.0
  %1074 = vmatpush1.msra.mxu0 %v990
  %1075 = vmatprep.subr.mxu0 0.0
  %1076 = vmatpush1.msra.mxu0 %v989
  %1077 = vmatprep.subr.mxu0 0.0
  %1078 = vmatpush2.msra.mxu0 0.0
  %1079 = vmatprep.subr.mxu0 0.0
  %1080 = vmatpush2.msra.mxu0 0.0
  %1081 = vmatprep.subr.mxu0 0.0
  %1082 = vmatpush2.msra.mxu0 0.0
  %1083 = vmatprep.subr.mxu0 0.0
  %1084 = vmatpush2.msra.mxu0 0.0
  %1085 = vmatprep.subr.mxu0 0.0
  %1086 = vmatpush2.msra.mxu0 0.0
  %1087 = vmatprep.subr.mxu0 0.0
  %1088 = vmatpush2.msra.mxu0 0.0
  %1089 = vmatprep.subr.mxu0 0.0
  %1090 = vmatpush2.msra.mxu0 0.0
  %1091 = vmatprep.subr.mxu0 0.0
  %1092 = vmatpush2.msra.mxu0 0.0
  %1093 = vmatprep.subr.mxu0 0.0
  %1094 = vmatpush2.msra.mxu0 0.0
  %1095 = vmatprep.subr.mxu0 0.0
  %1096 = vmatpush2.msra.mxu0 0.0
  %1097 = vmatprep.subr.mxu0 0.0
  %1098 = vmatpush2.msra.mxu0 0.0
  %1099 = vmatprep.subr.mxu0 0.0
  %1100 = vmatpush2.msra.mxu0 0.0
  %1101 = vmatprep.subr.mxu0 0.0
  %1102 = vmatpush2.msra.mxu0 0.0
  %1103 = vmatprep.subr.mxu0 0.0
  %1104 = vmatpush2.msra.mxu0 0.0
  %1105 = vmatprep.subr.mxu0 0.0
  %1106 = vmatpush2.msra.mxu0 0.0
  %1107 = vmatprep.subr.mxu0 0.0
  %1108 = vmatpush2.msra.mxu0 0.0
  %1109 = vmatprep.mubr.f32.mxu0 0.0
  %1110 = vmatmul.mubr.f32.gmra.mxu0 %v998
  %v1111 = vpop.f32.mrf.mxu0
  %v1112 = vadd.f32 0.0, %v1111
  %v1113 = vpop.f32.mrf.mxu0
  %1114 = vmatprep.mubr.f32.mxu0 0.0
  %1115 = vmatmul.mubr.f32.gmra.mxu0 %v1001
  %v1116 = vpop.f32.mrf.mxu0
  %v1117 = vadd.f32 0.0, %v1116
  %v1118 = vpop.f32.mrf.mxu0
  %1119 = vmatprep.mubr.f32.mxu0 0.0
  %1120 = vmatmul.mubr.f32.gmra.mxu0 %v1004
  %v1121 = vpop.f32.mrf.mxu0
  %v1122 = vadd.f32 0.0, %v1121
  %v1123 = vpop.f32.mrf.mxu0
  %1124 = vmatprep.mubr.f32.mxu0 0.0
  %1125 = vmatmul.mubr.f32.gmra.mxu0 %v1007
  %v1126 = vpop.f32.mrf.mxu0
  %v1127 = vadd.f32 0.0, %v1126
  %v1128 = vpop.f32.mrf.mxu0
  %1129 = vmatprep.mubr.f32.mxu0 0.0
  %1130 = vmatmul.mubr.f32.gmra.mxu0 %v1010
  %v1131 = vpop.f32.mrf.mxu0
  %v1132 = vadd.f32 0.0, %v1131
  %v1133 = vpop.f32.mrf.mxu0
  %1134 = vmatprep.mubr.f32.mxu0 0.0
  %1135 = vmatmul.mubr.f32.gmra.mxu0 %v1013
  %v1136 = vpop.f32.mrf.mxu0
  %v1137 = vadd.f32 0.0, %v1136
  %v1138 = vpop.f32.mrf.mxu0
  %1139 = vmatprep.mubr.f32.mxu0 0.0
  %1140 = vmatmul.mubr.f32.gmra.mxu0 %v1016
  %v1141 = vpop.f32.mrf.mxu0
  %v1142 = vadd.f32 0.0, %v1141
  %v1143 = vpop.f32.mrf.mxu0
  %1144 = vmatprep.mubr.f32.mxu0 0.0
  %1145 = vmatmul.mubr.f32.gmra.mxu0 %v1019
  %v1146 = vpop.f32.mrf.mxu0
  %v1147 = vadd.f32 0.0, %v1146
  %v1148 = vpop.f32.mrf.mxu0
  %1149 = vmatprep.mubr.f32.mxu0 0.0
  %1150 = vmatmul.mubr.f32.gmra.mxu0 %v1022
  %v1151 = vpop.f32.mrf.mxu0
  %v1152 = vadd.f32 0.0, %v1151
  %v1153 = vpop.f32.mrf.mxu0
  %1154 = vmatprep.mubr.f32.mxu0 0.0
  %1155 = vmatmul.mubr.f32.gmra.mxu0 %v1025
  %v1156 = vpop.f32.mrf.mxu0
  %v1157 = vadd.f32 0.0, %v1156
  %v1158 = vpop.f32.mrf.mxu0
  %1159 = vmatprep.mubr.f32.mxu0 0.0
  %1160 = vmatmul.mubr.f32.gmra.mxu0 %v1028
  %v1161 = vpop.f32.mrf.mxu0
  %v1162 = vadd.f32 0.0, %v1161
  %v1163 = vpop.f32.mrf.mxu0
  %1164 = vmatprep.mubr.f32.mxu0 0.0
  %1165 = vmatmul.mubr.f32.gmra.mxu0 %v1031
  %v1166 = vpop.f32.mrf.mxu0
  %v1167 = vadd.f32 0.0, %v1166
  %v1168 = vpop.f32.mrf.mxu0
  %1169 = vmatprep.mubr.f32.mxu0 0.0
  %1170 = vmatmul.mubr.f32.gmra.mxu0 %v1034
  %v1171 = vpop.f32.mrf.mxu0
  %v1172 = vadd.f32 0.0, %v1171
  %v1173 = vpop.f32.mrf.mxu0
  %1174 = vmatprep.mubr.f32.mxu0 0.0
  %1175 = vmatmul.mubr.f32.gmra.mxu0 %v1037
  %v1176 = vpop.f32.mrf.mxu0
  %v1177 = vadd.f32 0.0, %v1176
  %v1178 = vpop.f32.mrf.mxu0
  %1179 = vmatprep.mubr.f32.mxu0 0.0
  %1180 = vmatmul.mubr.f32.gmra.mxu0 %v1040
  %v1181 = vpop.f32.mrf.mxu0
  %v1182 = vadd.f32 0.0, %v1181
  %v1183 = vpop.f32.mrf.mxu0
  %1184 = vmatprep.mubr.f32.mxu0 0.0
  %1185 = vmatmul.mubr.f32.gmra.mxu0 %v1043
  %v1186 = vpop.f32.mrf.mxu0
  %v1187 = vadd.f32 0.0, %v1186
  %v1188 = vpop.f32.mrf.mxu0
  %1189 = vdwg.mxu0
  %v1190 = vld [vmem:[%s7] sm:$0x1]
  %v1192 = vlaneseq
  %v1193 = vshrl.u32 %v1192, 7
  %v1194 = vsub.s32 0, %v1193
  %v1195 = vrot.slane %v1190, %v1194
  %1197 = vmatprep.subr.mxu0 0.0
  %1198 = vmatpush1.msra.mxu0 %v1187
  %1199 = vmatprep.subr.mxu0 0.0
  %1200 = vmatpush1.msra.mxu0 %v1182
  %1201 = vmatprep.subr.mxu0 0.0
  %1202 = vmatpush1.msra.mxu0 %v1177
  %1203 = vmatprep.subr.mxu0 0.0
  %1204 = vmatpush1.msra.mxu0 %v1172
  %1205 = vmatprep.subr.mxu0 0.0
  %1206 = vmatpush1.msra.mxu0 %v1167
  %1207 = vmatprep.subr.mxu0 0.0
  %1208 = vmatpush1.msra.mxu0 %v1162
  %1209 = vmatprep.subr.mxu0 0.0
  %1210 = vmatpush1.msra.mxu0 %v1157
  %1211 = vmatprep.subr.mxu0 0.0
  %1212 = vmatpush1.msra.mxu0 %v1152
  %1213 = vmatprep.subr.mxu0 0.0
  %1214 = vmatpush1.msra.mxu0 %v1147
  %1215 = vmatprep.subr.mxu0 0.0
  %1216 = vmatpush1.msra.mxu0 %v1142
  %1217 = vmatprep.subr.mxu0 0.0
  %1218 = vmatpush1.msra.mxu0 %v1137
  %1219 = vmatprep.subr.mxu0 0.0
  %1220 = vmatpush1.msra.mxu0 %v1132
  %1221 = vmatprep.subr.mxu0 0.0
  %1222 = vmatpush1.msra.mxu0 %v1127
  %1223 = vmatprep.subr.mxu0 0.0
  %1224 = vmatpush1.msra.mxu0 %v1122
  %1225 = vmatprep.subr.mxu0 0.0
  %1226 = vmatpush1.msra.mxu0 %v1117
  %1227 = vmatprep.subr.mxu0 0.0
  %1228 = vmatpush1.msra.mxu0 %v1112
  %1229 = vmatprep.subr.mxu0 0.0
  %1230 = vmatpush2.msra.mxu0 0.0
  %1231 = vmatprep.subr.mxu0 0.0
  %1232 = vmatpush2.msra.mxu0 0.0
  %1233 = vmatprep.subr.mxu0 0.0
  %1234 = vmatpush2.msra.mxu0 0.0
  %1235 = vmatprep.subr.mxu0 0.0
  %1236 = vmatpush2.msra.mxu0 0.0
  %1237 = vmatprep.subr.mxu0 0.0
  %1238 = vmatpush2.msra.mxu0 0.0
  %1239 = vmatprep.subr.mxu0 0.0
  %1240 = vmatpush2.msra.mxu0 0.0
  %1241 = vmatprep.subr.mxu0 0.0
  %1242 = vmatpush2.msra.mxu0 0.0
  %1243 = vmatprep.subr.mxu0 0.0
  %1244 = vmatpush2.msra.mxu0 0.0
  %1245 = vmatprep.subr.mxu0 0.0
  %1246 = vmatpush2.msra.mxu0 0.0
  %1247 = vmatprep.subr.mxu0 0.0
  %1248 = vmatpush2.msra.mxu0 0.0
  %1249 = vmatprep.subr.mxu0 0.0
  %1250 = vmatpush2.msra.mxu0 0.0
  %1251 = vmatprep.subr.mxu0 0.0
  %1252 = vmatpush2.msra.mxu0 0.0
  %1253 = vmatprep.subr.mxu0 0.0
  %1254 = vmatpush2.msra.mxu0 0.0
  %1255 = vmatprep.subr.mxu0 0.0
  %1256 = vmatpush2.msra.mxu0 0.0
  %1257 = vmatprep.subr.mxu0 0.0
  %1258 = vmatpush2.msra.mxu0 0.0
  %1259 = vmatprep.subr.mxu0 0.0
  %1260 = vmatpush2.msra.mxu0 0.0
  %1261 = vmatprep.mubr.f32.mxu0 0.0
  %1262 = vmatmul.mubr.f32.gmra.mxu0 %v973
  %v1263 = vpop.f32.mrf.mxu0
  %v1264 = vadd.f32 %v1195, %v1263
  %v1265 = vpop.f32.mrf.mxu0
  %1266 = vmatprep.mubr.f32.mxu0 0.0
  %1267 = vmatmul.mubr.f32.gmra.mxu0 %v974
  %v1268 = vpop.f32.mrf.mxu0
  %v1269 = vadd.f32 %v1195, %v1268
  %v1270 = vpop.f32.mrf.mxu0
  %1271 = vmatprep.mubr.f32.mxu0 0.0
  %1272 = vmatmul.mubr.f32.gmra.mxu0 %v975
  %v1273 = vpop.f32.mrf.mxu0
  %v1274 = vadd.f32 %v1195, %v1273
  %v1275 = vpop.f32.mrf.mxu0
  %1276 = vmatprep.mubr.f32.mxu0 0.0
  %1277 = vmatmul.mubr.f32.gmra.mxu0 %v976
  %v1278 = vpop.f32.mrf.mxu0
  %v1279 = vadd.f32 %v1195, %v1278
  %v1280 = vpop.f32.mrf.mxu0
  %1281 = vmatprep.mubr.f32.mxu0 0.0
  %1282 = vmatmul.mubr.f32.gmra.mxu0 %v977
  %v1283 = vpop.f32.mrf.mxu0
  %v1284 = vadd.f32 %v1195, %v1283
  %v1285 = vpop.f32.mrf.mxu0
  %1286 = vmatprep.mubr.f32.mxu0 0.0
  %1287 = vmatmul.mubr.f32.gmra.mxu0 %v978
  %v1288 = vpop.f32.mrf.mxu0
  %v1289 = vadd.f32 %v1195, %v1288
  %v1290 = vpop.f32.mrf.mxu0
  %1291 = vmatprep.mubr.f32.mxu0 0.0
  %1292 = vmatmul.mubr.f32.gmra.mxu0 %v979
  %v1293 = vpop.f32.mrf.mxu0
  %v1294 = vadd.f32 %v1195, %v1293
  %v1295 = vpop.f32.mrf.mxu0
  %1296 = vmatprep.mubr.f32.mxu0 0.0
  %1297 = vmatmul.mubr.f32.gmra.mxu0 %v980
  %v1298 = vpop.f32.mrf.mxu0
  %v1299 = vadd.f32 %v1195, %v1298
  %v1300 = vpop.f32.mrf.mxu0
  %1301 = vmatprep.mubr.f32.mxu0 0.0
  %1302 = vmatmul.mubr.f32.gmra.mxu0 %v981
  %v1303 = vpop.f32.mrf.mxu0
  %v1304 = vadd.f32 %v1195, %v1303
  %v1305 = vpop.f32.mrf.mxu0
  %1306 = vmatprep.mubr.f32.mxu0 0.0
  %1307 = vmatmul.mubr.f32.gmra.mxu0 %v982
  %v1308 = vpop.f32.mrf.mxu0
  %v1309 = vadd.f32 %v1195, %v1308
  %v1310 = vpop.f32.mrf.mxu0
  %1311 = vmatprep.mubr.f32.mxu0 0.0
  %1312 = vmatmul.mubr.f32.gmra.mxu0 %v983
  %v1313 = vpop.f32.mrf.mxu0
  %v1314 = vadd.f32 %v1195, %v1313
  %v1315 = vpop.f32.mrf.mxu0
  %1316 = vmatprep.mubr.f32.mxu0 0.0
  %1317 = vmatmul.mubr.f32.gmra.mxu0 %v984
  %v1318 = vpop.f32.mrf.mxu0
  %v1319 = vadd.f32 %v1195, %v1318
  %v1320 = vpop.f32.mrf.mxu0
  %1321 = vmatprep.mubr.f32.mxu0 0.0
  %1322 = vmatmul.mubr.f32.gmra.mxu0 %v985
  %v1323 = vpop.f32.mrf.mxu0
  %v1324 = vadd.f32 %v1195, %v1323
  %v1325 = vpop.f32.mrf.mxu0
  %1326 = vmatprep.mubr.f32.mxu0 0.0
  %1327 = vmatmul.mubr.f32.gmra.mxu0 %v986
  %v1328 = vpop.f32.mrf.mxu0
  %v1329 = vadd.f32 %v1195, %v1328
  %v1330 = vpop.f32.mrf.mxu0
  %1331 = vmatprep.mubr.f32.mxu0 0.0
  %1332 = vmatmul.mubr.f32.gmra.mxu0 %v987
  %v1333 = vpop.f32.mrf.mxu0
  %v1334 = vadd.f32 %v1195, %v1333
  %v1335 = vpop.f32.mrf.mxu0
  %1336 = vmatprep.mubr.f32.mxu0 0.0
  %1337 = vmatmul.mubr.f32.gmra.mxu0 %v988
  %v1338 = vpop.f32.mrf.mxu0
  %v1339 = vadd.f32 %v1195, %v1338
  %v1340 = vpop.f32.mrf.mxu0
  %1341 = vdwg.mxu0
  %v1342 = vld [vmem:[%s6] sm:$0xff]
  %v1343 = vld [vmem:[%s6 + $0x8] sm:$0xff]
  %v1344 = vld [vmem:[%s6 + $0x10] sm:$0xff]
  %v1345 = vld [vmem:[%s6 + $0x18] sm:$0xff]
  %v1346 = vld [vmem:[%s6 + $0x20] sm:$0xff]
  %v1347 = vld [vmem:[%s6 + $0x28] sm:$0xff]
  %v1348 = vld [vmem:[%s6 + $0x30] sm:$0xff]
  %v1349 = vld [vmem:[%s6 + $0x38] sm:$0xff]
  %v1350 = vsel %vm31, %v1264, %v1334
  %v1351 = vsel %vm31, %v1269, %v1339
  %1352 = vmatprep.subr.mxu0 0.0
  %1353 = vmatpush1.msra.mxu0 0.0
  %1354 = vmatprep.subr.mxu0 0.0
  %1355 = vmatpush1.msra.mxu0 0.0
  %1356 = vmatprep.subr.mxu0 0.0
  %1357 = vmatpush1.msra.mxu0 0.0
  %1358 = vmatprep.subr.mxu0 0.0
  %1359 = vmatpush1.msra.mxu0 0.0
  %1360 = vmatprep.subr.mxu0 0.0
  %1361 = vmatpush1.msra.mxu0 0.0
  %1362 = vmatprep.subr.mxu0 0.0
  %1363 = vmatpush1.msra.mxu0 0.0
  %1364 = vmatprep.subr.mxu0 0.0
  %1365 = vmatpush1.msra.mxu0 0.0
  %1366 = vmatprep.subr.mxu0 0.0
  %1367 = vmatpush1.msra.mxu0 0.0
  %1368 = vmatprep.subr.mxu0 0.0
  %1369 = vmatpush1.msra.mxu0 %v1349
  %1370 = vmatprep.subr.mxu0 0.0
  %1371 = vmatpush1.msra.mxu0 %v1348
  %1372 = vmatprep.subr.mxu0 0.0
  %1373 = vmatpush1.msra.mxu0 %v1347
  %1374 = vmatprep.subr.mxu0 0.0
  %1375 = vmatpush1.msra.mxu0 %v1346
  %1376 = vmatprep.subr.mxu0 0.0
  %1377 = vmatpush1.msra.mxu0 %v1345
  %1378 = vmatprep.subr.mxu0 0.0
  %1379 = vmatpush1.msra.mxu0 %v1344
  %1380 = vmatprep.subr.mxu0 0.0
  %1381 = vmatpush1.msra.mxu0 %v1343
  %1382 = vmatprep.subr.mxu0 0.0
  %1383 = vmatpush1.msra.mxu0 %v1342
  %1384 = vmatprep.subr.mxu0 0.0
  %1385 = vmatpush2.msra.mxu0 0.0
  %1386 = vmatprep.subr.mxu0 0.0
  %1387 = vmatpush2.msra.mxu0 0.0
  %1388 = vmatprep.subr.mxu0 0.0
  %1389 = vmatpush2.msra.mxu0 0.0
  %1390 = vmatprep.subr.mxu0 0.0
  %1391 = vmatpush2.msra.mxu0 0.0
  %1392 = vmatprep.subr.mxu0 0.0
  %1393 = vmatpush2.msra.mxu0 0.0
  %1394 = vmatprep.subr.mxu0 0.0
  %1395 = vmatpush2.msra.mxu0 0.0
  %1396 = vmatprep.subr.mxu0 0.0
  %1397 = vmatpush2.msra.mxu0 0.0
  %1398 = vmatprep.subr.mxu0 0.0
  %1399 = vmatpush2.msra.mxu0 0.0
  %1400 = vmatprep.subr.mxu0 0.0
  %1401 = vmatpush2.msra.mxu0 0.0
  %1402 = vmatprep.subr.mxu0 0.0
  %1403 = vmatpush2.msra.mxu0 0.0
  %1404 = vmatprep.subr.mxu0 0.0
  %1405 = vmatpush2.msra.mxu0 0.0
  %1406 = vmatprep.subr.mxu0 0.0
  %1407 = vmatpush2.msra.mxu0 0.0
  %1408 = vmatprep.subr.mxu0 0.0
  %1409 = vmatpush2.msra.mxu0 0.0
  %1410 = vmatprep.subr.mxu0 0.0
  %1411 = vmatpush2.msra.mxu0 0.0
  %1412 = vmatprep.subr.mxu0 0.0
  %1413 = vmatpush2.msra.mxu0 0.0
  %1414 = vmatprep.subr.mxu0 0.0
  %1415 = vmatpush2.msra.mxu0 0.0
  %1416 = vmatprep.mubr.f32.mxu0 0.0
  %1417 = vmatmul.mubr.f32.gmra.mxu0 %v267
  %v1418 = vpop.f32.mrf.mxu0
  %v1419 = vadd.f32 0.0, %v1418
  %v1420 = vpop.f32.mrf.mxu0
  %1421 = vmatprep.mubr.f32.mxu0 0.0
  %1422 = vmatmul.mubr.f32.gmra.mxu0 %v267
  %v1423 = vpop.f32.mrf.mxu0
  %v1424 = vadd.f32 0.0, %v1423
  %v1425 = vpop.f32.mrf.mxu0
  %1426 = vdwg.mxu0
  %v1427 = vadd.f32 %v1350, %v1419
  %v1428 = vadd.f32 %v1351, %v1424
  %v1429 = vtanh.pop %v1427
  %v1430 = vtanh.pop %v1428
  %v1431 = vsel %vm31, %v1274, %v1324
  %v1432 = vsel %vm31, %v1279, %v1329
  %v1434 = vsel %vm265, %v1429, 0
  %v1437 = vsel %vm265, %v1430, 0
  %1439 = vmatprep.subr.mxu0 0.0
  %1440 = vmatpush1.msra.mxu0 0.0
  %1441 = vmatprep.subr.mxu0 0.0
  %1442 = vmatpush1.msra.mxu0 0.0
  %1443 = vmatprep.subr.mxu0 0.0
  %1444 = vmatpush1.msra.mxu0 0.0
  %1445 = vmatprep.subr.mxu0 0.0
  %1446 = vmatpush1.msra.mxu0 0.0
  %1447 = vmatprep.subr.mxu0 0.0
  %1448 = vmatpush1.msra.mxu0 0.0
  %1449 = vmatprep.subr.mxu0 0.0
  %1450 = vmatpush1.msra.mxu0 0.0
  %1451 = vmatprep.subr.mxu0 0.0
  %1452 = vmatpush1.msra.mxu0 0.0
  %1453 = vmatprep.subr.mxu0 0.0
  %1454 = vmatpush1.msra.mxu0 0.0
  %1455 = vmatprep.subr.mxu0 0.0
  %1456 = vmatpush1.msra.mxu0 %v1349
  %1457 = vmatprep.subr.mxu0 0.0
  %1458 = vmatpush1.msra.mxu0 %v1348
  %1459 = vmatprep.subr.mxu0 0.0
  %1460 = vmatpush1.msra.mxu0 %v1347
  %1461 = vmatprep.subr.mxu0 0.0
  %1462 = vmatpush1.msra.mxu0 %v1346
  %1463 = vmatprep.subr.mxu0 0.0
  %1464 = vmatpush1.msra.mxu0 %v1345
  %1465 = vmatprep.subr.mxu0 0.0
  %1466 = vmatpush1.msra.mxu0 %v1344
  %1467 = vmatprep.subr.mxu0 0.0
  %1468 = vmatpush1.msra.mxu0 %v1343
  %1469 = vmatprep.subr.mxu0 0.0
  %1470 = vmatpush1.msra.mxu0 %v1342
  %1471 = vmatprep.subr.mxu0 0.0
  %1472 = vmatpush2.msra.mxu0 0.0
  %1473 = vmatprep.subr.mxu0 0.0
  %1474 = vmatpush2.msra.mxu0 0.0
  %1475 = vmatprep.subr.mxu0 0.0
  %1476 = vmatpush2.msra.mxu0 0.0
  %1477 = vmatprep.subr.mxu0 0.0
  %1478 = vmatpush2.msra.mxu0 0.0
  %1479 = vmatprep.subr.mxu0 0.0
  %1480 = vmatpush2.msra.mxu0 0.0
  %1481 = vmatprep.subr.mxu0 0.0
  %1482 = vmatpush2.msra.mxu0 0.0
  %1483 = vmatprep.subr.mxu0 0.0
  %1484 = vmatpush2.msra.mxu0 0.0
  %1485 = vmatprep.subr.mxu0 0.0
  %1486 = vmatpush2.msra.mxu0 0.0
  %1487 = vmatprep.subr.mxu0 0.0
  %1488 = vmatpush2.msra.mxu0 0.0
  %1489 = vmatprep.subr.mxu0 0.0
  %1490 = vmatpush2.msra.mxu0 0.0
  %1491 = vmatprep.subr.mxu0 0.0
  %1492 = vmatpush2.msra.mxu0 0.0
  %1493 = vmatprep.subr.mxu0 0.0
  %1494 = vmatpush2.msra.mxu0 0.0
  %1495 = vmatprep.subr.mxu0 0.0
  %1496 = vmatpush2.msra.mxu0 0.0
  %1497 = vmatprep.subr.mxu0 0.0
  %1498 = vmatpush2.msra.mxu0 0.0
  %1499 = vmatprep.subr.mxu0 0.0
  %1500 = vmatpush2.msra.mxu0 0.0
  %1501 = vmatprep.subr.mxu0 0.0
  %1502 = vmatpush2.msra.mxu0 0.0
  %1503 = vmatprep.mubr.f32.mxu0 0.0
  %1504 = vmatmul.mubr.f32.gmra.mxu0 %v1434
  %v1505 = vpop.f32.mrf.mxu0
  %v1506 = vadd.f32 0.0, %v1505
  %v1507 = vpop.f32.mrf.mxu0
  %1508 = vmatprep.mubr.f32.mxu0 0.0
  %1509 = vmatmul.mubr.f32.gmra.mxu0 %v1437
  %v1510 = vpop.f32.mrf.mxu0
  %v1511 = vadd.f32 0.0, %v1510
  %v1512 = vpop.f32.mrf.mxu0
  %1513 = vdwg.mxu0
  %v1514 = vadd.f32 %v1431, %v1506
  %v1515 = vadd.f32 %v1432, %v1511
  %v1516 = vtanh.pop %v1514
  %v1517 = vtanh.pop %v1515
  %v1518 = vsel %vm31, %v1284, %v1314
  %v1519 = vsel %vm31, %v1289, %v1319
  %v1521 = vsel %vm265, %v1516, 0
  %v1524 = vsel %vm265, %v1517, 0
  %1526 = vmatprep.subr.mxu0 0.0
  %1527 = vmatpush1.msra.mxu0 0.0
  %1528 = vmatprep.subr.mxu0 0.0
  %1529 = vmatpush1.msra.mxu0 0.0
  %1530 = vmatprep.subr.mxu0 0.0
  %1531 = vmatpush1.msra.mxu0 0.0
  %1532 = vmatprep.subr.mxu0 0.0
  %1533 = vmatpush1.msra.mxu0 0.0
  %1534 = vmatprep.subr.mxu0 0.0
  %1535 = vmatpush1.msra.mxu0 0.0
  %1536 = vmatprep.subr.mxu0 0.0
  %1537 = vmatpush1.msra.mxu0 0.0
  %1538 = vmatprep.subr.mxu0 0.0
  %1539 = vmatpush1.msra.mxu0 0.0
  %1540 = vmatprep.subr.mxu0 0.0
  %1541 = vmatpush1.msra.mxu0 0.0
  %1542 = vmatprep.subr.mxu0 0.0
  %1543 = vmatpush1.msra.mxu0 %v1349
  %1544 = vmatprep.subr.mxu0 0.0
  %1545 = vmatpush1.msra.mxu0 %v1348
  %1546 = vmatprep.subr.mxu0 0.0
  %1547 = vmatpush1.msra.mxu0 %v1347
  %1548 = vmatprep.subr.mxu0 0.0
  %1549 = vmatpush1.msra.mxu0 %v1346
  %1550 = vmatprep.subr.mxu0 0.0
  %1551 = vmatpush1.msra.mxu0 %v1345
  %1552 = vmatprep.subr.mxu0 0.0
  %1553 = vmatpush1.msra.mxu0 %v1344
  %1554 = vmatprep.subr.mxu0 0.0
  %1555 = vmatpush1.msra.mxu0 %v1343
  %1556 = vmatprep.subr.mxu0 0.0
  %1557 = vmatpush1.msra.mxu0 %v1342
  %1558 = vmatprep.subr.mxu0 0.0
  %1559 = vmatpush2.msra.mxu0 0.0
  %1560 = vmatprep.subr.mxu0 0.0
  %1561 = vmatpush2.msra.mxu0 0.0
  %1562 = vmatprep.subr.mxu0 0.0
  %1563 = vmatpush2.msra.mxu0 0.0
  %1564 = vmatprep.subr.mxu0 0.0
  %1565 = vmatpush2.msra.mxu0 0.0
  %1566 = vmatprep.subr.mxu0 0.0
  %1567 = vmatpush2.msra.mxu0 0.0
  %1568 = vmatprep.subr.mxu0 0.0
  %1569 = vmatpush2.msra.mxu0 0.0
  %1570 = vmatprep.subr.mxu0 0.0
  %1571 = vmatpush2.msra.mxu0 0.0
  %1572 = vmatprep.subr.mxu0 0.0
  %1573 = vmatpush2.msra.mxu0 0.0
  %1574 = vmatprep.subr.mxu0 0.0
  %1575 = vmatpush2.msra.mxu0 0.0
  %1576 = vmatprep.subr.mxu0 0.0
  %1577 = vmatpush2.msra.mxu0 0.0
  %1578 = vmatprep.subr.mxu0 0.0
  %1579 = vmatpush2.msra.mxu0 0.0
  %1580 = vmatprep.subr.mxu0 0.0
  %1581 = vmatpush2.msra.mxu0 0.0
  %1582 = vmatprep.subr.mxu0 0.0
  %1583 = vmatpush2.msra.mxu0 0.0
  %1584 = vmatprep.subr.mxu0 0.0
  %1585 = vmatpush2.msra.mxu0 0.0
  %1586 = vmatprep.subr.mxu0 0.0
  %1587 = vmatpush2.msra.mxu0 0.0
  %1588 = vmatprep.subr.mxu0 0.0
  %1589 = vmatpush2.msra.mxu0 0.0
  %1590 = vmatprep.mubr.f32.mxu0 0.0
  %1591 = vmatmul.mubr.f32.gmra.mxu0 %v1521
  %v1592 = vpop.f32.mrf.mxu0
  %v1593 = vadd.f32 0.0, %v1592
  %v1594 = vpop.f32.mrf.mxu0
  %1595 = vmatprep.mubr.f32.mxu0 0.0
  %1596 = vmatmul.mubr.f32.gmra.mxu0 %v1524
  %v1597 = vpop.f32.mrf.mxu0
  %v1598 = vadd.f32 0.0, %v1597
  %v1599 = vpop.f32.mrf.mxu0
  %1600 = vdwg.mxu0
  %v1601 = vadd.f32 %v1518, %v1593
  %v1602 = vadd.f32 %v1519, %v1598
  %v1603 = vtanh.pop %v1601
  %v1604 = vtanh.pop %v1602
  %v1605 = vsel %vm31, %v1294, %v1304
  %v1606 = vsel %vm31, %v1299, %v1309
  %v1608 = vsel %vm265, %v1603, 0
  %v1611 = vsel %vm265, %v1604, 0
  %1613 = vmatprep.subr.mxu0 0.0
  %1614 = vmatpush1.msra.mxu0 0.0
  %1615 = vmatprep.subr.mxu0 0.0
  %1616 = vmatpush1.msra.mxu0 0.0
  %1617 = vmatprep.subr.mxu0 0.0
  %1618 = vmatpush1.msra.mxu0 0.0
  %1619 = vmatprep.subr.mxu0 0.0
  %1620 = vmatpush1.msra.mxu0 0.0
  %1621 = vmatprep.subr.mxu0 0.0
  %1622 = vmatpush1.msra.mxu0 0.0
  %1623 = vmatprep.subr.mxu0 0.0
  %1624 = vmatpush1.msra.mxu0 0.0
  %1625 = vmatprep.subr.mxu0 0.0
  %1626 = vmatpush1.msra.mxu0 0.0
  %1627 = vmatprep.subr.mxu0 0.0
  %1628 = vmatpush1.msra.mxu0 0.0
  %1629 = vmatprep.subr.mxu0 0.0
  %1630 = vmatpush1.msra.mxu0 %v1349
  %1631 = vmatprep.subr.mxu0 0.0
  %1632 = vmatpush1.msra.mxu0 %v1348
  %1633 = vmatprep.subr.mxu0 0.0
  %1634 = vmatpush1.msra.mxu0 %v1347
  %1635 = vmatprep.subr.mxu0 0.0
  %1636 = vmatpush1.msra.mxu0 %v1346
  %1637 = vmatprep.subr.mxu0 0.0
  %1638 = vmatpush1.msra.mxu0 %v1345
  %1639 = vmatprep.subr.mxu0 0.0
  %1640 = vmatpush1.msra.mxu0 %v1344
  %1641 = vmatprep.subr.mxu0 0.0
  %1642 = vmatpush1.msra.mxu0 %v1343
  %1643 = vmatprep.subr.mxu0 0.0
  %1644 = vmatpush1.msra.mxu0 %v1342
  %1645 = vmatprep.subr.mxu0 0.0
  %1646 = vmatpush2.msra.mxu0 0.0
  %1647 = vmatprep.subr.mxu0 0.0
  %1648 = vmatpush2.msra.mxu0 0.0
  %1649 = vmatprep.subr.mxu0 0.0
  %1650 = vmatpush2.msra.mxu0 0.0
  %1651 = vmatprep.subr.mxu0 0.0
  %1652 = vmatpush2.msra.mxu0 0.0
  %1653 = vmatprep.subr.mxu0 0.0
  %1654 = vmatpush2.msra.mxu0 0.0
  %1655 = vmatprep.subr.mxu0 0.0
  %1656 = vmatpush2.msra.mxu0 0.0
  %1657 = vmatprep.subr.mxu0 0.0
  %1658 = vmatpush2.msra.mxu0 0.0
  %1659 = vmatprep.subr.mxu0 0.0
  %1660 = vmatpush2.msra.mxu0 0.0
  %1661 = vmatprep.subr.mxu0 0.0
  %1662 = vmatpush2.msra.mxu0 0.0
  %1663 = vmatprep.subr.mxu0 0.0
  %1664 = vmatpush2.msra.mxu0 0.0
  %1665 = vmatprep.subr.mxu0 0.0
  %1666 = vmatpush2.msra.mxu0 0.0
  %1667 = vmatprep.subr.mxu0 0.0
  %1668 = vmatpush2.msra.mxu0 0.0
  %1669 = vmatprep.subr.mxu0 0.0
  %1670 = vmatpush2.msra.mxu0 0.0
  %1671 = vmatprep.subr.mxu0 0.0
  %1672 = vmatpush2.msra.mxu0 0.0
  %1673 = vmatprep.subr.mxu0 0.0
  %1674 = vmatpush2.msra.mxu0 0.0
  %1675 = vmatprep.subr.mxu0 0.0
  %1676 = vmatpush2.msra.mxu0 0.0
  %1677 = vmatprep.mubr.f32.mxu0 0.0
  %1678 = vmatmul.mubr.f32.gmra.mxu0 %v1608
  %v1679 = vpop.f32.mrf.mxu0
  %v1680 = vadd.f32 0.0, %v1679
  %v1681 = vpop.f32.mrf.mxu0
  %1682 = vmatprep.mubr.f32.mxu0 0.0
  %1683 = vmatmul.mubr.f32.gmra.mxu0 %v1611
  %v1684 = vpop.f32.mrf.mxu0
  %v1685 = vadd.f32 0.0, %v1684
  %v1686 = vpop.f32.mrf.mxu0
  %1687 = vdwg.mxu0
  %v1688 = vadd.f32 %v1605, %v1680
  %v1689 = vadd.f32 %v1606, %v1685
  %v1690 = vtanh.pop %v1688
  %v1691 = vtanh.pop %v1689
  %v1692 = vsel %vm31, %v1304, %v1294
  %v1693 = vsel %vm31, %v1309, %v1299
  %v1695 = vsel %vm265, %v1690, 0
  %v1698 = vsel %vm265, %v1691, 0
  %1700 = vmatprep.subr.mxu0 0.0
  %1701 = vmatpush1.msra.mxu0 0.0
  %1702 = vmatprep.subr.mxu0 0.0
  %1703 = vmatpush1.msra.mxu0 0.0
  %1704 = vmatprep.subr.mxu0 0.0
  %1705 = vmatpush1.msra.mxu0 0.0
  %1706 = vmatprep.subr.mxu0 0.0
  %1707 = vmatpush1.msra.mxu0 0.0
  %1708 = vmatprep.subr.mxu0 0.0
  %1709 = vmatpush1.msra.mxu0 0.0
  %1710 = vmatprep.subr.mxu0 0.0
  %1711 = vmatpush1.msra.mxu0 0.0
  %1712 = vmatprep.subr.mxu0 0.0
  %1713 = vmatpush1.msra.mxu0 0.0
  %1714 = vmatprep.subr.mxu0 0.0
  %1715 = vmatpush1.msra.mxu0 0.0
  %1716 = vmatprep.subr.mxu0 0.0
  %1717 = vmatpush1.msra.mxu0 %v1349
  %1718 = vmatprep.subr.mxu0 0.0
  %1719 = vmatpush1.msra.mxu0 %v1348
  %1720 = vmatprep.subr.mxu0 0.0
  %1721 = vmatpush1.msra.mxu0 %v1347
  %1722 = vmatprep.subr.mxu0 0.0
  %1723 = vmatpush1.msra.mxu0 %v1346
  %1724 = vmatprep.subr.mxu0 0.0
  %1725 = vmatpush1.msra.mxu0 %v1345
  %1726 = vmatprep.subr.mxu0 0.0
  %1727 = vmatpush1.msra.mxu0 %v1344
  %1728 = vmatprep.subr.mxu0 0.0
  %1729 = vmatpush1.msra.mxu0 %v1343
  %1730 = vmatprep.subr.mxu0 0.0
  %1731 = vmatpush1.msra.mxu0 %v1342
  %1732 = vmatprep.subr.mxu0 0.0
  %1733 = vmatpush2.msra.mxu0 0.0
  %1734 = vmatprep.subr.mxu0 0.0
  %1735 = vmatpush2.msra.mxu0 0.0
  %1736 = vmatprep.subr.mxu0 0.0
  %1737 = vmatpush2.msra.mxu0 0.0
  %1738 = vmatprep.subr.mxu0 0.0
  %1739 = vmatpush2.msra.mxu0 0.0
  %1740 = vmatprep.subr.mxu0 0.0
  %1741 = vmatpush2.msra.mxu0 0.0
  %1742 = vmatprep.subr.mxu0 0.0
  %1743 = vmatpush2.msra.mxu0 0.0
  %1744 = vmatprep.subr.mxu0 0.0
  %1745 = vmatpush2.msra.mxu0 0.0
  %1746 = vmatprep.subr.mxu0 0.0
  %1747 = vmatpush2.msra.mxu0 0.0
  %1748 = vmatprep.subr.mxu0 0.0
  %1749 = vmatpush2.msra.mxu0 0.0
  %1750 = vmatprep.subr.mxu0 0.0
  %1751 = vmatpush2.msra.mxu0 0.0
  %1752 = vmatprep.subr.mxu0 0.0
  %1753 = vmatpush2.msra.mxu0 0.0
  %1754 = vmatprep.subr.mxu0 0.0
  %1755 = vmatpush2.msra.mxu0 0.0
  %1756 = vmatprep.subr.mxu0 0.0
  %1757 = vmatpush2.msra.mxu0 0.0
  %1758 = vmatprep.subr.mxu0 0.0
  %1759 = vmatpush2.msra.mxu0 0.0
  %1760 = vmatprep.subr.mxu0 0.0
  %1761 = vmatpush2.msra.mxu0 0.0
  %1762 = vmatprep.subr.mxu0 0.0
  %1763 = vmatpush2.msra.mxu0 0.0
  %1764 = vmatprep.mubr.f32.mxu0 0.0
  %1765 = vmatmul.mubr.f32.gmra.mxu0 %v1695
  %v1766 = vpop.f32.mrf.mxu0
  %v1767 = vadd.f32 0.0, %v1766
  %v1768 = vpop.f32.mrf.mxu0
  %1769 = vmatprep.mubr.f32.mxu0 0.0
  %1770 = vmatmul.mubr.f32.gmra.mxu0 %v1698
  %v1771 = vpop.f32.mrf.mxu0
  %v1772 = vadd.f32 0.0, %v1771
  %v1773 = vpop.f32.mrf.mxu0
  %1774 = vdwg.mxu0
  %v1775 = vadd.f32 %v1692, %v1767
  %v1776 = vadd.f32 %v1693, %v1772
  %v1777 = vtanh.pop %v1775
  %v1778 = vtanh.pop %v1776
  %v1779 = vsel %vm31, %v1314, %v1284
  %v1780 = vsel %vm31, %v1319, %v1289
  %v1782 = vsel %vm265, %v1777, 0
  %v1785 = vsel %vm265, %v1778, 0
  %1787 = vmatprep.subr.mxu0 0.0
  %1788 = vmatpush1.msra.mxu0 0.0
  %1789 = vmatprep.subr.mxu0 0.0
  %1790 = vmatpush1.msra.mxu0 0.0
  %1791 = vmatprep.subr.mxu0 0.0
  %1792 = vmatpush1.msra.mxu0 0.0
  %1793 = vmatprep.subr.mxu0 0.0
  %1794 = vmatpush1.msra.mxu0 0.0
  %1795 = vmatprep.subr.mxu0 0.0
  %1796 = vmatpush1.msra.mxu0 0.0
  %1797 = vmatprep.subr.mxu0 0.0
  %1798 = vmatpush1.msra.mxu0 0.0
  %1799 = vmatprep.subr.mxu0 0.0
  %1800 = vmatpush1.msra.mxu0 0.0
  %1801 = vmatprep.subr.mxu0 0.0
  %1802 = vmatpush1.msra.mxu0 0.0
  %1803 = vmatprep.subr.mxu0 0.0
  %1804 = vmatpush1.msra.mxu0 %v1349
  %1805 = vmatprep.subr.mxu0 0.0
  %1806 = vmatpush1.msra.mxu0 %v1348
  %1807 = vmatprep.subr.mxu0 0.0
  %1808 = vmatpush1.msra.mxu0 %v1347
  %1809 = vmatprep.subr.mxu0 0.0
  %1810 = vmatpush1.msra.mxu0 %v1346
  %1811 = vmatprep.subr.mxu0 0.0
  %1812 = vmatpush1.msra.mxu0 %v1345
  %1813 = vmatprep.subr.mxu0 0.0
  %1814 = vmatpush1.msra.mxu0 %v1344
  %1815 = vmatprep.subr.mxu0 0.0
  %1816 = vmatpush1.msra.mxu0 %v1343
  %1817 = vmatprep.subr.mxu0 0.0
  %1818 = vmatpush1.msra.mxu0 %v1342
  %1819 = vmatprep.subr.mxu0 0.0
  %1820 = vmatpush2.msra.mxu0 0.0
  %1821 = vmatprep.subr.mxu0 0.0
  %1822 = vmatpush2.msra.mxu0 0.0
  %1823 = vmatprep.subr.mxu0 0.0
  %1824 = vmatpush2.msra.mxu0 0.0
  %1825 = vmatprep.subr.mxu0 0.0
  %1826 = vmatpush2.msra.mxu0 0.0
  %1827 = vmatprep.subr.mxu0 0.0
  %1828 = vmatpush2.msra.mxu0 0.0
  %1829 = vmatprep.subr.mxu0 0.0
  %1830 = vmatpush2.msra.mxu0 0.0
  %1831 = vmatprep.subr.mxu0 0.0
  %1832 = vmatpush2.msra.mxu0 0.0
  %1833 = vmatprep.subr.mxu0 0.0
  %1834 = vmatpush2.msra.mxu0 0.0
  %1835 = vmatprep.subr.mxu0 0.0
  %1836 = vmatpush2.msra.mxu0 0.0
  %1837 = vmatprep.subr.mxu0 0.0
  %1838 = vmatpush2.msra.mxu0 0.0
  %1839 = vmatprep.subr.mxu0 0.0
  %1840 = vmatpush2.msra.mxu0 0.0
  %1841 = vmatprep.subr.mxu0 0.0
  %1842 = vmatpush2.msra.mxu0 0.0
  %1843 = vmatprep.subr.mxu0 0.0
  %1844 = vmatpush2.msra.mxu0 0.0
  %1845 = vmatprep.subr.mxu0 0.0
  %1846 = vmatpush2.msra.mxu0 0.0
  %1847 = vmatprep.subr.mxu0 0.0
  %1848 = vmatpush2.msra.mxu0 0.0
  %1849 = vmatprep.subr.mxu0 0.0
  %1850 = vmatpush2.msra.mxu0 0.0
  %1851 = vmatprep.mubr.f32.mxu0 0.0
  %1852 = vmatmul.mubr.f32.gmra.mxu0 %v1782
  %v1853 = vpop.f32.mrf.mxu0
  %v1854 = vadd.f32 0.0, %v1853
  %v1855 = vpop.f32.mrf.mxu0
  %1856 = vmatprep.mubr.f32.mxu0 0.0
  %1857 = vmatmul.mubr.f32.gmra.mxu0 %v1785
  %v1858 = vpop.f32.mrf.mxu0
  %v1859 = vadd.f32 0.0, %v1858
  %v1860 = vpop.f32.mrf.mxu0
  %1861 = vdwg.mxu0
  %v1862 = vadd.f32 %v1779, %v1854
  %v1863 = vadd.f32 %v1780, %v1859
  %v1864 = vtanh.pop %v1862
  %v1865 = vtanh.pop %v1863
  %v1866 = vsel %vm31, %v1324, %v1274
  %v1867 = vsel %vm31, %v1329, %v1279
  %v1869 = vsel %vm265, %v1864, 0
  %v1872 = vsel %vm265, %v1865, 0
  %1874 = vmatprep.subr.mxu0 0.0
  %1875 = vmatpush1.msra.mxu0 0.0
  %1876 = vmatprep.subr.mxu0 0.0
  %1877 = vmatpush1.msra.mxu0 0.0
  %1878 = vmatprep.subr.mxu0 0.0
  %1879 = vmatpush1.msra.mxu0 0.0
  %1880 = vmatprep.subr.mxu0 0.0
  %1881 = vmatpush1.msra.mxu0 0.0
  %1882 = vmatprep.subr.mxu0 0.0
  %1883 = vmatpush1.msra.mxu0 0.0
  %1884 = vmatprep.subr.mxu0 0.0
  %1885 = vmatpush1.msra.mxu0 0.0
  %1886 = vmatprep.subr.mxu0 0.0
  %1887 = vmatpush1.msra.mxu0 0.0
  %1888 = vmatprep.subr.mxu0 0.0
  %1889 = vmatpush1.msra.mxu0 0.0
  %1890 = vmatprep.subr.mxu0 0.0
  %1891 = vmatpush1.msra.mxu0 %v1349
  %1892 = vmatprep.subr.mxu0 0.0
  %1893 = vmatpush1.msra.mxu0 %v1348
  %1894 = vmatprep.subr.mxu0 0.0
  %1895 = vmatpush1.msra.mxu0 %v1347
  %1896 = vmatprep.subr.mxu0 0.0
  %1897 = vmatpush1.msra.mxu0 %v1346
  %1898 = vmatprep.subr.mxu0 0.0
  %1899 = vmatpush1.msra.mxu0 %v1345
  %1900 = vmatprep.subr.mxu0 0.0
  %1901 = vmatpush1.msra.mxu0 %v1344
  %1902 = vmatprep.subr.mxu0 0.0
  %1903 = vmatpush1.msra.mxu0 %v1343
  %1904 = vmatprep.subr.mxu0 0.0
  %1905 = vmatpush1.msra.mxu0 %v1342
  %1906 = vmatprep.subr.mxu0 0.0
  %1907 = vmatpush2.msra.mxu0 0.0
  %1908 = vmatprep.subr.mxu0 0.0
  %1909 = vmatpush2.msra.mxu0 0.0
  %1910 = vmatprep.subr.mxu0 0.0
  %1911 = vmatpush2.msra.mxu0 0.0
  %1912 = vmatprep.subr.mxu0 0.0
  %1913 = vmatpush2.msra.mxu0 0.0
  %1914 = vmatprep.subr.mxu0 0.0
  %1915 = vmatpush2.msra.mxu0 0.0
  %1916 = vmatprep.subr.mxu0 0.0
  %1917 = vmatpush2.msra.mxu0 0.0
  %1918 = vmatprep.subr.mxu0 0.0
  %1919 = vmatpush2.msra.mxu0 0.0
  %1920 = vmatprep.subr.mxu0 0.0
  %1921 = vmatpush2.msra.mxu0 0.0
  %1922 = vmatprep.subr.mxu0 0.0
  %1923 = vmatpush2.msra.mxu0 0.0
  %1924 = vmatprep.subr.mxu0 0.0
  %1925 = vmatpush2.msra.mxu0 0.0
  %1926 = vmatprep.subr.mxu0 0.0
  %1927 = vmatpush2.msra.mxu0 0.0
  %1928 = vmatprep.subr.mxu0 0.0
  %1929 = vmatpush2.msra.mxu0 0.0
  %1930 = vmatprep.subr.mxu0 0.0
  %1931 = vmatpush2.msra.mxu0 0.0
  %1932 = vmatprep.subr.mxu0 0.0
  %1933 = vmatpush2.msra.mxu0 0.0
  %1934 = vmatprep.subr.mxu0 0.0
  %1935 = vmatpush2.msra.mxu0 0.0
  %1936 = vmatprep.subr.mxu0 0.0
  %1937 = vmatpush2.msra.mxu0 0.0
  %1938 = vmatprep.mubr.f32.mxu0 0.0
  %1939 = vmatmul.mubr.f32.gmra.mxu0 %v1869
  %v1940 = vpop.f32.mrf.mxu0
  %v1941 = vadd.f32 0.0, %v1940
  %v1942 = vpop.f32.mrf.mxu0
  %1943 = vmatprep.mubr.f32.mxu0 0.0
  %1944 = vmatmul.mubr.f32.gmra.mxu0 %v1872
  %v1945 = vpop.f32.mrf.mxu0
  %v1946 = vadd.f32 0.0, %v1945
  %v1947 = vpop.f32.mrf.mxu0
  %1948 = vdwg.mxu0
  %v1949 = vadd.f32 %v1866, %v1941
  %v1950 = vadd.f32 %v1867, %v1946
  %v1951 = vtanh.pop %v1949
  %v1952 = vtanh.pop %v1950
  %v1953 = vsel %vm31, %v1334, %v1264
  %v1954 = vsel %vm31, %v1339, %v1269
  %v1956 = vsel %vm265, %v1951, 0
  %v1959 = vsel %vm265, %v1952, 0
  %1961 = vmatprep.subr.mxu0 0.0
  %1962 = vmatpush1.msra.mxu0 0.0
  %1963 = vmatprep.subr.mxu0 0.0
  %1964 = vmatpush1.msra.mxu0 0.0
  %1965 = vmatprep.subr.mxu0 0.0
  %1966 = vmatpush1.msra.mxu0 0.0
  %1967 = vmatprep.subr.mxu0 0.0
  %1968 = vmatpush1.msra.mxu0 0.0
  %1969 = vmatprep.subr.mxu0 0.0
  %1970 = vmatpush1.msra.mxu0 0.0
  %1971 = vmatprep.subr.mxu0 0.0
  %1972 = vmatpush1.msra.mxu0 0.0
  %1973 = vmatprep.subr.mxu0 0.0
  %1974 = vmatpush1.msra.mxu0 0.0
  %1975 = vmatprep.subr.mxu0 0.0
  %1976 = vmatpush1.msra.mxu0 0.0
  %1977 = vmatprep.subr.mxu0 0.0
  %1978 = vmatpush1.msra.mxu0 %v1349
  %1979 = vmatprep.subr.mxu0 0.0
  %1980 = vmatpush1.msra.mxu0 %v1348
  %1981 = vmatprep.subr.mxu0 0.0
  %1982 = vmatpush1.msra.mxu0 %v1347
  %1983 = vmatprep.subr.mxu0 0.0
  %1984 = vmatpush1.msra.mxu0 %v1346
  %1985 = vmatprep.subr.mxu0 0.0
  %1986 = vmatpush1.msra.mxu0 %v1345
  %1987 = vmatprep.subr.mxu0 0.0
  %1988 = vmatpush1.msra.mxu0 %v1344
  %1989 = vmatprep.subr.mxu0 0.0
  %1990 = vmatpush1.msra.mxu0 %v1343
  %1991 = vmatprep.subr.mxu0 0.0
  %1992 = vmatpush1.msra.mxu0 %v1342
  %1993 = vmatprep.subr.mxu0 0.0
  %1994 = vmatpush2.msra.mxu0 0.0
  %1995 = vmatprep.subr.mxu0 0.0
  %1996 = vmatpush2.msra.mxu0 0.0
  %1997 = vmatprep.subr.mxu0 0.0
  %1998 = vmatpush2.msra.mxu0 0.0
  %1999 = vmatprep.subr.mxu0 0.0
  %2000 = vmatpush2.msra.mxu0 0.0
  %2001 = vmatprep.subr.mxu0 0.0
  %2002 = vmatpush2.msra.mxu0 0.0
  %2003 = vmatprep.subr.mxu0 0.0
  %2004 = vmatpush2.msra.mxu0 0.0
  %2005 = vmatprep.subr.mxu0 0.0
  %2006 = vmatpush2.msra.mxu0 0.0
  %2007 = vmatprep.subr.mxu0 0.0
  %2008 = vmatpush2.msra.mxu0 0.0
  %2009 = vmatprep.subr.mxu0 0.0
  %2010 = vmatpush2.msra.mxu0 0.0
  %2011 = vmatprep.subr.mxu0 0.0
  %2012 = vmatpush2.msra.mxu0 0.0
  %2013 = vmatprep.subr.mxu0 0.0
  %2014 = vmatpush2.msra.mxu0 0.0
  %2015 = vmatprep.subr.mxu0 0.0
  %2016 = vmatpush2.msra.mxu0 0.0
  %2017 = vmatprep.subr.mxu0 0.0
  %2018 = vmatpush2.msra.mxu0 0.0
  %2019 = vmatprep.subr.mxu0 0.0
  %2020 = vmatpush2.msra.mxu0 0.0
  %2021 = vmatprep.subr.mxu0 0.0
  %2022 = vmatpush2.msra.mxu0 0.0
  %2023 = vmatprep.subr.mxu0 0.0
  %2024 = vmatpush2.msra.mxu0 0.0
  %2025 = vmatprep.mubr.f32.mxu0 0.0
  %2026 = vmatmul.mubr.f32.gmra.mxu0 %v1956
  %v2027 = vpop.f32.mrf.mxu0
  %v2028 = vadd.f32 0.0, %v2027
  %v2029 = vpop.f32.mrf.mxu0
  %2030 = vmatprep.mubr.f32.mxu0 0.0
  %2031 = vmatmul.mubr.f32.gmra.mxu0 %v1959
  %v2032 = vpop.f32.mrf.mxu0
  %v2033 = vadd.f32 0.0, %v2032
  %v2034 = vpop.f32.mrf.mxu0
  %2035 = vdwg.mxu0
  %v2036 = vadd.f32 %v1953, %v2028
  %v2037 = vadd.f32 %v1954, %v2033
  %v2038 = vtanh.pop %v2036
  %v2039 = vtanh.pop %v2037
  %v2040 = vsel %vm31, %v1429, %v2038
  %v2041 = vsel %vm31, %v1430, %v2039
  %v2042 = vsel %vm31, %v1516, %v1951
  %v2043 = vsel %vm31, %v1517, %v1952
  %v2044 = vsel %vm31, %v1603, %v1864
  %v2045 = vsel %vm31, %v1604, %v1865
  %v2046 = vsel %vm31, %v1690, %v1777
  %v2047 = vsel %vm31, %v1691, %v1778
  %v2048 = vsel %vm31, %v1777, %v1690
  %v2049 = vsel %vm31, %v1778, %v1691
  %v2050 = vsel %vm31, %v1864, %v1603
  %v2051 = vsel %vm31, %v1865, %v1604
  %v2052 = vsel %vm31, %v1951, %v1516
  %v2053 = vsel %vm31, %v1952, %v1517
  %v2054 = vsel %vm31, %v2038, %v1429
  %v2055 = vsel %vm31, %v2039, %v1430
  %2056 = vst.msk [vmem:[%s8] sm:$0xff] %vm265, %v2040
  %2057 = vst.msk [vmem:[%s8 + $0x8] sm:$0xff] %vm265, %v2041
  %2058 = vst.msk [vmem:[%s8 + $0x10] sm:$0xff] %vm265, %v2042
  %2059 = vst.msk [vmem:[%s8 + $0x18] sm:$0xff] %vm265, %v2043
  %2060 = vst.msk [vmem:[%s8 + $0x20] sm:$0xff] %vm265, %v2044
  %2061 = vst.msk [vmem:[%s8 + $0x28] sm:$0xff] %vm265, %v2045
  %2062 = vst.msk [vmem:[%s8 + $0x30] sm:$0xff] %vm265, %v2046
  %2063 = vst.msk [vmem:[%s8 + $0x38] sm:$0xff] %vm265, %v2047
  %2064 = vst.msk [vmem:[%s8 + $0x40] sm:$0xff] %vm265, %v2048
  %2065 = vst.msk [vmem:[%s8 + $0x48] sm:$0xff] %vm265, %v2049
  %2066 = vst.msk [vmem:[%s8 + $0x50] sm:$0xff] %vm265, %v2050
  %2067 = vst.msk [vmem:[%s8 + $0x58] sm:$0xff] %vm265, %v2051
  %2068 = vst.msk [vmem:[%s8 + $0x60] sm:$0xff] %vm265, %v2052
  %2069 = vst.msk [vmem:[%s8 + $0x68] sm:$0xff] %vm265, %v2053
  %2070 = vst.msk [vmem:[%s8 + $0x70] sm:$0xff] %vm265, %v2054
  %2071 = vst.msk [vmem:[%s8 + $0x78] sm:$0xff] %vm265, %v2055
  // Predicated region
  $region34: #{_lambda_.1} parent=0 // pred_check
    _
  $region35: #{_lambda_.1} parent=0 // pred_check_branch
    %2073 = sbr.rel (0) target = $region37
  $region36: #{_lambda_.1} parent=0 // pred_region
    _
  $region37: #{_lambda_.1} parent=0 // pred_fallthru
    _
  // Predicated region
  $region38: #{_lambda_.1} parent=0 // pred_check
    _
  $region39: #{_lambda_.1} parent=0 // pred_check_branch
    %2075 = sbr.rel (0) target = $region41
  $region40: #{_lambda_.1} parent=0 // pred_region
    _
  $region41: #{_lambda_.1} parent=0 // pred_fallthru
    _

</llo_original>
